<compile_context>
chip_gen: v6e
topology: v6e:2x2x1
jax: 0.10.0
libtpu: 0.0.40
codegen_flags: <defaults>
</compile_context>

<pallas_src>
import math

import numpy as np
import jax
import jax.numpy as jnp
from jax.experimental import pallas as pl
from jax.experimental.pallas import tpu as pltpu

LANES = 128
_COMPILER_PARAMS = pltpu.CompilerParams(
    dimension_semantics=("parallel",),
    vmem_limit_bytes=32 * 1024 * 1024,
)


def _pick_tile(m, candidates=(512, 384, 256, 128)):
    """Largest nice row-tile that evenly divides m; fall back to whole m."""
    for c in candidates:
        if c <= m and m % c == 0:
            return c
    return m


# ----------------------------------------------------------------------------
# Pallas kernels
# ----------------------------------------------------------------------------
def _conv_sq_pool_kernel(cols_ref, w_ref, b_ref, o_ref):
    # cols_ref: (4, tm, K) bf16 -- patch rows for the 4 members of each 2x2 pool window
    # w_ref:    (K, 128)  bf16 -- conv weight, OC zero-padded to 128 lanes
    # b_ref:    (1, 128)  f32
    # o_ref:    (tm, 128) f32  -- max_q (patch_q @ w + b)^2   (conv -> square -> pool)
    w = w_ref[...]
    b = b_ref[...]
    acc = None
    for q in range(4):  # statically unrolled: 4 MXU passes, epilogue on the VPU
        y = jnp.dot(cols_ref[q], w, preferred_element_type=jnp.float32) + b
        y = y * y  # Square activation (f32 epilogue)
        acc = y if acc is None else jnp.maximum(acc, y)
    o_ref[...] = acc


def _mlp_kernel(x_ref, w1_ref, b1_ref, w2_ref, b2_ref, w3_ref, b3_ref, o_ref):
    # Fused fc1 -> square -> fc2 -> square -> fc3; everything stays in VMEM/vregs.
    h = jnp.dot(x_ref[...], w1_ref[...], preferred_element_type=jnp.float32) + b1_ref[...]
    h = h * h
    h = jnp.dot(h.astype(jnp.bfloat16), w2_ref[...],
                preferred_element_type=jnp.float32) + b2_ref[...]
    h = h * h
    y = jnp.dot(h.astype(jnp.bfloat16), w3_ref[...],
                preferred_element_type=jnp.float32) + b3_ref[...]
    o_ref[...] = y


# ----------------------------------------------------------------------------
# pallas_call wrappers
# ----------------------------------------------------------------------------
def conv_sq_pool(cols, w_pad, b_pad):
    """cols: (4, M, K) bf16, w_pad: (K, 128) bf16, b_pad: (1, 128) f32 -> (M, 128) f32."""
    Q, M, K = cols.shape
    N = w_pad.shape[1]
    tm = _pick_tile(M)
    return pl.pallas_call(
        _conv_sq_pool_kernel,
        out_shape=jax.ShapeDtypeStruct((M, N), jnp.float32),
        grid_spec=pltpu.PrefetchScalarGridSpec(
            num_scalar_prefetch=0,
            grid=(M // tm,),
            in_specs=[
                pl.BlockSpec((Q, tm, K), lambda m: (0, m, 0)),
                pl.BlockSpec((K, N), lambda m: (0, 0)),
                pl.BlockSpec((1, N), lambda m: (0, 0)),
            ],
            out_specs=pl.BlockSpec((tm, N), lambda m: (m, 0)),
        ),
        compiler_params=_COMPILER_PARAMS,
    )(cols, w_pad, b_pad)


def fused_mlp(x_bf16, w1, b1, w2, b2, w3, b3):
    """x: (B, 256) bf16; weights lane-padded to 128; returns (B, 128) f32."""
    B, K = x_bf16.shape
    N = w1.shape[1]
    tb = _pick_tile(B)
    full = lambda i: (0, 0)
    return pl.pallas_call(
        _mlp_kernel,
        out_shape=jax.ShapeDtypeStruct((B, N), jnp.float32),
        grid_spec=pltpu.PrefetchScalarGridSpec(
            num_scalar_prefetch=0,
            grid=(B // tb,),
            in_specs=[
                pl.BlockSpec((tb, K), lambda i: (i, 0)),
                pl.BlockSpec((K, N), full), pl.BlockSpec((1, N), full),
                pl.BlockSpec((N, N), full), pl.BlockSpec((1, N), full),
                pl.BlockSpec((N, N), full), pl.BlockSpec((1, N), full),
            ],
            out_specs=pl.BlockSpec((tb, N), lambda i: (i, 0)),
        ),
        compiler_params=_COMPILER_PARAMS,
    )(x_bf16, w1, b1, w2, b2, w3, b3)


# ----------------------------------------------------------------------------
# Glue: pooled im2col (layout-only; the matmul/square/pool math is in-kernel)
# ----------------------------------------------------------------------------
# TODO(synk): patch extraction is still done by XLA in HBM; a fully in-kernel
# patch build needs sublane-crossing reshapes that Mosaic handles poorly at
# these shapes, so only the layout plumbing stays outside the kernel.
def _im2col_pooled(x_nhwc, k):
    """x: (B,H,W,C) -> cols (4, B*Hp*Wp, C*k*k).  Leading axis = the 4 members
    of each 2x2 pool window; columns ordered C-major then kh, kw to match
    PyTorch's w.reshape(OC, C*k*k)."""
    B, H, W, C = x_nhwc.shape
    Ho, Wo = H - k + 1, W - k + 1
    Hp, Wp = Ho // 2, Wo // 2
    patches = [x_nhwc[:, i:i + Ho, j:j + Wo, :] for i in range(k) for j in range(k)]
    p = jnp.stack(patches, axis=-1)                     # (B, Ho, Wo, C, k*k)
    p = p.reshape(B, Hp, 2, Wp, 2, C * k * k)           # split pool windows
    p = p.transpose(2, 4, 0, 1, 3, 5)                   # (dy, dx, B, Hp, Wp, K)
    return p.reshape(4, B * Hp * Wp, C * k * k), Hp, Wp


def conv_square_pool_stage(x_nhwc, w_oihw, b):
    """Conv2d(stride=1, pad=0) + Square + MaxPool2d(2,2), channels-last in/out."""
    B = x_nhwc.shape[0]
    OC, IC, k, _ = w_oihw.shape
    cols, Hp, Wp = _im2col_pooled(x_nhwc.astype(jnp.bfloat16), k)
    w_pad = jnp.zeros((IC * k * k, LANES), jnp.bfloat16).at[:, :OC].set(
        w_oihw.reshape(OC, IC * k * k).T.astype(jnp.bfloat16))
    b_pad = jnp.zeros((1, LANES), jnp.float32).at[0, :OC].set(b)
    y = conv_sq_pool(cols, w_pad, b_pad)                # (B*Hp*Wp, 128)
    return y[:, :OC].reshape(B, Hp, Wp, OC)             # channels-last output


# ----------------------------------------------------------------------------
# Parameter initialization (mirrors the PyTorch module's init scheme)
# ----------------------------------------------------------------------------
def init_params(key):
    ks = jax.random.split(key, 8)
    params = {}

    n1 = 5 * 5 * 6
    params["conv1_w"] = jax.random.normal(ks[0], (6, 1, 5, 5), jnp.float32) * math.sqrt(2.0 / n1)
    params["conv1_b"] = jnp.zeros((6,), jnp.float32)

    n2 = 5 * 5 * 16
    params["conv2_w"] = jax.random.normal(ks[1], (16, 6, 5, 5), jnp.float32) * math.sqrt(2.0 / n2)
    params["conv2_b"] = jnp.zeros((16,), jnp.float32)

    def xavier_uniform(k, out_f, in_f):
        bound = math.sqrt(6.0 / (in_f + out_f))
        return jax.random.uniform(k, (out_f, in_f), jnp.float32, -bound, bound)

    params["fc1_w"] = xavier_uniform(ks[2], 120, 256)
    params["fc1_b"] = jnp.zeros((120,), jnp.float32)
    params["fc2_w"] = xavier_uniform(ks[3], 84, 120)
    params["fc2_b"] = jnp.zeros((84,), jnp.float32)
    params["fc3_w"] = xavier_uniform(ks[4], 10, 84)
    params["fc3_b"] = jnp.zeros((10,), jnp.float32)
    return params


# ----------------------------------------------------------------------------
# Forward pass (matches SquareLeNet.forward)
# ----------------------------------------------------------------------------
def square_lenet_forward(params, x_nchw):
    B = x_nchw.shape[0]
    x = jnp.transpose(x_nchw, (0, 2, 3, 1))             # NHWC (free: C == 1)

    x = conv_square_pool_stage(x, params["conv1_w"], params["conv1_b"])  # (B,12,12,6)
    x = conv_square_pool_stage(x, params["conv2_w"], params["conv2_b"])  # (B,4,4,16)

    # NHWC flatten; fc1 columns are permuted below so this is numerically
    # identical to PyTorch's NCHW x.view(B, -1) flatten.
    xf = x.reshape(B, 16 * 4 * 4).astype(jnp.bfloat16)

    # Prepare padded / permuted classifier weights (tiny; folded into the jit).
    p = np.arange(256)
    hh, ww, cc = p // 64, (p // 16) % 4, p % 16
    src = cc * 16 + hh * 4 + ww                         # NCHW flat index per NHWC slot
    w1 = params["fc1_w"][:, src].T                      # (256, 120) NHWC-ordered rows
    w1p = jnp.zeros((256, LANES), jnp.bfloat16).at[:, :120].set(w1.astype(jnp.bfloat16))
    b1p = jnp.zeros((1, LANES), jnp.float32).at[0, :120].set(params["fc1_b"])
    w2p = jnp.zeros((LANES, LANES), jnp.bfloat16).at[:120, :84].set(
        params["fc2_w"].T.astype(jnp.bfloat16))
    b2p = jnp.zeros((1, LANES), jnp.float32).at[0, :84].set(params["fc2_b"])
    w3p = jnp.zeros((LANES, LANES), jnp.bfloat16).at[:84, :10].set(
        params["fc3_w"].T.astype(jnp.bfloat16))
    b3p = jnp.zeros((1, LANES), jnp.float32).at[0, :10].set(params["fc3_b"])

    logits = fused_mlp(xf, w1p, b1p, w2p, b2p, w3p, b3p)  # (B, 128)
    return logits[:, :10]


if __name__ == "__main__":
    key = jax.random.PRNGKey(0)
    k_param, k_input = jax.random.split(key)

    params = init_params(k_param)
    # LeNet expects 1x28x28 inputs (so the 16*4*4 flatten is valid); batch=2.
    x = jax.random.normal(k_input, (2, 1, 28, 28), jnp.float32)

    out = jax.jit(square_lenet_forward)(params, x)
    out = jax.block_until_ready(out)
    assert out.shape == (2, 10), out.shape
    print("KERNEL_OK")
</pallas_src>

<mosaic_0001>
module attributes {stable_mosaic.version = 11 : i64} {
  func.func @_conv_sq_pool_kernel(%arg0: i32, %arg1: memref<4x288x25xbf16, #tpu.memory_space<vmem>>, %arg2: memref<25x128xbf16, #tpu.memory_space<vmem>>, %arg3: memref<1x128xf32, #tpu.memory_space<vmem>>, %arg4: memref<288x128xf32, #tpu.memory_space<vmem>>) attributes {dimension_semantics = [#tpu.dimension_semantics<parallel>], iteration_bounds = array<i64: 1>, scalar_prefetch = 0 : i64, scratch_operands = 0 : i64, tpu.core_type = #tpu.core_type<tc>, window_params = [{transform_indices = @transform_0, window_bounds = array<i64: 4, 288, 25>}, {pipeline_mode = #tpu.pipeline_mode<synchronous>, transform_indices = @transform_1, window_bounds = array<i64: 25, 128>}, {pipeline_mode = #tpu.pipeline_mode<synchronous>, transform_indices = @transform_2, window_bounds = array<i64: 1, 128>}, {transform_indices = @transform_3, window_bounds = array<i64: 288, 128>}]} {
    %c0 = arith.constant 0 : index
    %c0_0 = arith.constant 0 : index
    %0 = vector.load %arg2[%c0, %c0_0] : memref<25x128xbf16, #tpu.memory_space<vmem>>, vector<25x128xbf16>
    %c0_1 = arith.constant 0 : index
    %c0_2 = arith.constant 0 : index
    %1 = vector.load %arg3[%c0_1, %c0_2] : memref<1x128xf32, #tpu.memory_space<vmem>>, vector<1x128xf32>
    %c0_3 = arith.constant 0 : index
    %c0_4 = arith.constant 0 : index
    %c0_5 = arith.constant 0 : index
    %2 = vector.load %arg1[%c0_3, %c0_4, %c0_5] : memref<4x288x25xbf16, #tpu.memory_space<vmem>>, vector<1x288x25xbf16>
    %3 = vector.shape_cast %2 : vector<1x288x25xbf16> to vector<288x25xbf16>
    %cst = arith.constant dense<0.000000e+00> : vector<288x128xf32>
    %4 = tpu.matmul %3, %0, %cst {dimension_numbers = #tpu.dot_dimension_numbers<[1], [0], [0], [1], [0, 0, 1, 1], [], []>} : vector<288x25xbf16>, vector<25x128xbf16>, vector<288x128xf32> -> vector<288x128xf32>
    %5 = vector.broadcast %1 : vector<1x128xf32> to vector<288x128xf32>
    %6 = arith.addf %4, %5 : vector<288x128xf32>
    %7 = arith.mulf %6, %6 : vector<288x128xf32>
    %c1 = arith.constant 1 : index
    %c0_6 = arith.constant 0 : index
    %c0_7 = arith.constant 0 : index
    %8 = vector.load %arg1[%c1, %c0_6, %c0_7] : memref<4x288x25xbf16, #tpu.memory_space<vmem>>, vector<1x288x25xbf16>
    %9 = vector.shape_cast %8 : vector<1x288x25xbf16> to vector<288x25xbf16>
    %cst_8 = arith.constant dense<0.000000e+00> : vector<288x128xf32>
    %10 = tpu.matmul %9, %0, %cst_8 {dimension_numbers = #tpu.dot_dimension_numbers<[1], [0], [0], [1], [0, 0, 1, 1], [], []>} : vector<288x25xbf16>, vector<25x128xbf16>, vector<288x128xf32> -> vector<288x128xf32>
    %11 = vector.broadcast %1 : vector<1x128xf32> to vector<288x128xf32>
    %12 = arith.addf %10, %11 : vector<288x128xf32>
    %13 = arith.mulf %12, %12 : vector<288x128xf32>
    %14 = arith.maximumf %7, %13 : vector<288x128xf32>
    %c2 = arith.constant 2 : index
    %c0_9 = arith.constant 0 : index
    %c0_10 = arith.constant 0 : index
    %15 = vector.load %arg1[%c2, %c0_9, %c0_10] : memref<4x288x25xbf16, #tpu.memory_space<vmem>>, vector<1x288x25xbf16>
    %16 = vector.shape_cast %15 : vector<1x288x25xbf16> to vector<288x25xbf16>
    %cst_11 = arith.constant dense<0.000000e+00> : vector<288x128xf32>
    %17 = tpu.matmul %16, %0, %cst_11 {dimension_numbers = #tpu.dot_dimension_numbers<[1], [0], [0], [1], [0, 0, 1, 1], [], []>} : vector<288x25xbf16>, vector<25x128xbf16>, vector<288x128xf32> -> vector<288x128xf32>
    %18 = vector.broadcast %1 : vector<1x128xf32> to vector<288x128xf32>
    %19 = arith.addf %17, %18 : vector<288x128xf32>
    %20 = arith.mulf %19, %19 : vector<288x128xf32>
    %21 = arith.maximumf %14, %20 : vector<288x128xf32>
    %c3 = arith.constant 3 : index
    %c0_12 = arith.constant 0 : index
    %c0_13 = arith.constant 0 : index
    %22 = vector.load %arg1[%c3, %c0_12, %c0_13] : memref<4x288x25xbf16, #tpu.memory_space<vmem>>, vector<1x288x25xbf16>
    %23 = vector.shape_cast %22 : vector<1x288x25xbf16> to vector<288x25xbf16>
    %cst_14 = arith.constant dense<0.000000e+00> : vector<288x128xf32>
    %24 = tpu.matmul %23, %0, %cst_14 {dimension_numbers = #tpu.dot_dimension_numbers<[1], [0], [0], [1], [0, 0, 1, 1], [], []>} : vector<288x25xbf16>, vector<25x128xbf16>, vector<288x128xf32> -> vector<288x128xf32>
    %25 = vector.broadcast %1 : vector<1x128xf32> to vector<288x128xf32>
    %26 = arith.addf %24, %25 : vector<288x128xf32>
    %27 = arith.mulf %26, %26 : vector<288x128xf32>
    %28 = arith.maximumf %21, %27 : vector<288x128xf32>
    %c0_15 = arith.constant 0 : index
    %c0_16 = arith.constant 0 : index
    %29 = vector.load %arg4[%c0_15, %c0_16] : memref<288x128xf32, #tpu.memory_space<vmem>>, vector<288x128xf32>
    tpu.vector_store %arg4[%c0_15, %c0_16], %28 {strides = array<i32>} : memref<288x128xf32, #tpu.memory_space<vmem>>, vector<288x128xf32>,
    return
  }
  func.func @transform_0(%arg0: i32) -> (i32, i32, i32) {
    %c0_i32 = arith.constant 0 : i32
    %c0_i32_0 = arith.constant 0 : i32
    %c0_i32_1 = arith.constant 0 : i32
    return %c0_i32, %arg0, %c0_i32_0 : i32, i32, i32
  }
  func.func @transform_1(%arg0: i32) -> (i32, i32) {
    %c0_i32 = arith.constant 0 : i32
    %c0_i32_0 = arith.constant 0 : i32
    %c0_i32_1 = arith.constant 0 : i32
    return %c0_i32, %c0_i32_0 : i32, i32
  }
  func.func @transform_2(%arg0: i32) -> (i32, i32) {
    %c0_i32 = arith.constant 0 : i32
    %c0_i32_0 = arith.constant 0 : i32
    %c0_i32_1 = arith.constant 0 : i32
    return %c0_i32, %c0_i32_0 : i32, i32
  }
  func.func @transform_3(%arg0: i32) -> (i32, i32) {
    %c0_i32 = arith.constant 0 : i32
    %c0_i32_0 = arith.constant 0 : i32
    return %arg0, %c0_i32 : i32, i32
  }
}

module attributes {stable_mosaic.version = 11 : i64} {
  func.func @_conv_sq_pool_kernel(%arg0: i32, %arg1: memref<4x32x150xbf16, #tpu.memory_space<vmem>>, %arg2: memref<150x128xbf16, #tpu.memory_space<vmem>>, %arg3: memref<1x128xf32, #tpu.memory_space<vmem>>, %arg4: memref<32x128xf32, #tpu.memory_space<vmem>>) attributes {dimension_semantics = [#tpu.dimension_semantics<parallel>], iteration_bounds = array<i64: 1>, scalar_prefetch = 0 : i64, scratch_operands = 0 : i64, tpu.core_type = #tpu.core_type<tc>, window_params = [{transform_indices = @transform_0, window_bounds = array<i64: 4, 32, 150>}, {pipeline_mode = #tpu.pipeline_mode<synchronous>, transform_indices = @transform_1, window_bounds = array<i64: 150, 128>}, {pipeline_mode = #tpu.pipeline_mode<synchronous>, transform_indices = @transform_2, window_bounds = array<i64: 1, 128>}, {transform_indices = @transform_3, window_bounds = array<i64: 32, 128>}]} {
    %c0 = arith.constant 0 : index
    %c0_0 = arith.constant 0 : index
    %0 = vector.load %arg2[%c0, %c0_0] : memref<150x128xbf16, #tpu.memory_space<vmem>>, vector<150x128xbf16>
    %c0_1 = arith.constant 0 : index
    %c0_2 = arith.constant 0 : index
    %1 = vector.load %arg3[%c0_1, %c0_2] : memref<1x128xf32, #tpu.memory_space<vmem>>, vector<1x128xf32>
    %c0_3 = arith.constant 0 : index
    %c0_4 = arith.constant 0 : index
    %c0_5 = arith.constant 0 : index
    %2 = vector.load %arg1[%c0_3, %c0_4, %c0_5] : memref<4x32x150xbf16, #tpu.memory_space<vmem>>, vector<1x32x150xbf16>
    %3 = vector.shape_cast %2 : vector<1x32x150xbf16> to vector<32x150xbf16>
    %cst = arith.constant dense<0.000000e+00> : vector<32x128xf32>
    %4 = tpu.matmul %3, %0, %cst {dimension_numbers = #tpu.dot_dimension_numbers<[1], [0], [0], [1], [0, 0, 1, 1], [], []>} : vector<32x150xbf16>, vector<150x128xbf16>, vector<32x128xf32> -> vector<32x128xf32>
    %5 = vector.broadcast %1 : vector<1x128xf32> to vector<32x128xf32>
    %6 = arith.addf %4, %5 : vector<32x128xf32>
    %7 = arith.mulf %6, %6 : vector<32x128xf32>
    %c1 = arith.constant 1 : index
    %c0_6 = arith.constant 0 : index
    %c0_7 = arith.constant 0 : index
    %8 = vector.load %arg1[%c1, %c0_6, %c0_7] : memref<4x32x150xbf16, #tpu.memory_space<vmem>>, vector<1x32x150xbf16>
    %9 = vector.shape_cast %8 : vector<1x32x150xbf16> to vector<32x150xbf16>
    %cst_8 = arith.constant dense<0.000000e+00> : vector<32x128xf32>
    %10 = tpu.matmul %9, %0, %cst_8 {dimension_numbers = #tpu.dot_dimension_numbers<[1], [0], [0], [1], [0, 0, 1, 1], [], []>} : vector<32x150xbf16>, vector<150x128xbf16>, vector<32x128xf32> -> vector<32x128xf32>
    %11 = vector.broadcast %1 : vector<1x128xf32> to vector<32x128xf32>
    %12 = arith.addf %10, %11 : vector<32x128xf32>
    %13 = arith.mulf %12, %12 : vector<32x128xf32>
    %14 = arith.maximumf %7, %13 : vector<32x128xf32>
    %c2 = arith.constant 2 : index
    %c0_9 = arith.constant 0 : index
    %c0_10 = arith.constant 0 : index
    %15 = vector.load %arg1[%c2, %c0_9, %c0_10] : memref<4x32x150xbf16, #tpu.memory_space<vmem>>, vector<1x32x150xbf16>
    %16 = vector.shape_cast %15 : vector<1x32x150xbf16> to vector<32x150xbf16>
    %cst_11 = arith.constant dense<0.000000e+00> : vector<32x128xf32>
    %17 = tpu.matmul %16, %0, %cst_11 {dimension_numbers = #tpu.dot_dimension_numbers<[1], [0], [0], [1], [0, 0, 1, 1], [], []>} : vector<32x150xbf16>, vector<150x128xbf16>, vector<32x128xf32> -> vector<32x128xf32>
    %18 = vector.broadcast %1 : vector<1x128xf32> to vector<32x128xf32>
    %19 = arith.addf %17, %18 : vector<32x128xf32>
    %20 = arith.mulf %19, %19 : vector<32x128xf32>
    %21 = arith.maximumf %14, %20 : vector<32x128xf32>
    %c3 = arith.constant 3 : index
    %c0_12 = arith.constant 0 : index
    %c0_13 = arith.constant 0 : index
    %22 = vector.load %arg1[%c3, %c0_12, %c0_13] : memref<4x32x150xbf16, #tpu.memory_space<vmem>>, vector<1x32x150xbf16>
    %23 = vector.shape_cast %22 : vector<1x32x150xbf16> to vector<32x150xbf16>
    %cst_14 = arith.constant dense<0.000000e+00> : vector<32x128xf32>
    %24 = tpu.matmul %23, %0, %cst_14 {dimension_numbers = #tpu.dot_dimension_numbers<[1], [0], [0], [1], [0, 0, 1, 1], [], []>} : vector<32x150xbf16>, vector<150x128xbf16>, vector<32x128xf32> -> vector<32x128xf32>
    %25 = vector.broadcast %1 : vector<1x128xf32> to vector<32x128xf32>
    %26 = arith.addf %24, %25 : vector<32x128xf32>
    %27 = arith.mulf %26, %26 : vector<32x128xf32>
    %28 = arith.maximumf %21, %27 : vector<32x128xf32>
    %c0_15 = arith.constant 0 : index
    %c0_16 = arith.constant 0 : index
    %29 = vector.load %arg4[%c0_15, %c0_16] : memref<32x128xf32, #tpu.memory_space<vmem>>, vector<32x128xf32>
    tpu.vector_store %arg4[%c0_15, %c0_16], %28 {strides = array<i32>} : memref<32x128xf32, #tpu.memory_space<vmem>>, vector<32x128xf32>,
    return
  }
  func.func @transform_0(%arg0: i32) -> (i32, i32, i32) {
    %c0_i32 = arith.constant 0 : i32
    %c0_i32_0 = arith.constant 0 : i32
    %c0_i32_1 = arith.constant 0 : i32
    return %c0_i32, %arg0, %c0_i32_0 : i32, i32, i32
  }
  func.func @transform_1(%arg0: i32) -> (i32, i32) {
    %c0_i32 = arith.constant 0 : i32
    %c0_i32_0 = arith.constant 0 : i32
    %c0_i32_1 = arith.constant 0 : i32
    return %c0_i32, %c0_i32_0 : i32, i32
  }
  func.func @transform_2(%arg0: i32) -> (i32, i32) {
    %c0_i32 = arith.constant 0 : i32
    %c0_i32_0 = arith.constant 0 : i32
    %c0_i32_1 = arith.constant 0 : i32
    return %c0_i32, %c0_i32_0 : i32, i32
  }
  func.func @transform_3(%arg0: i32) -> (i32, i32) {
    %c0_i32 = arith.constant 0 : i32
    %c0_i32_0 = arith.constant 0 : i32
    return %arg0, %c0_i32 : i32, i32
  }
}

module attributes {stable_mosaic.version = 11 : i64} {
  func.func @_mlp_kernel(%arg0: i32, %arg1: memref<2x256xbf16, #tpu.memory_space<vmem>>, %arg2: memref<256x128xbf16, #tpu.memory_space<vmem>>, %arg3: memref<1x128xf32, #tpu.memory_space<vmem>>, %arg4: memref<128x128xbf16, #tpu.memory_space<vmem>>, %arg5: memref<1x128xf32, #tpu.memory_space<vmem>>, %arg6: memref<128x128xbf16, #tpu.memory_space<vmem>>, %arg7: memref<1x128xf32, #tpu.memory_space<vmem>>, %arg8: memref<2x128xf32, #tpu.memory_space<vmem>>) attributes {dimension_semantics = [#tpu.dimension_semantics<parallel>], iteration_bounds = array<i64: 1>, scalar_prefetch = 0 : i64, scratch_operands = 0 : i64, tpu.core_type = #tpu.core_type<tc>, window_params = [{transform_indices = @transform_0, window_bounds = array<i64: 2, 256>}, {pipeline_mode = #tpu.pipeline_mode<synchronous>, transform_indices = @transform_1, window_bounds = array<i64: 256, 128>}, {pipeline_mode = #tpu.pipeline_mode<synchronous>, transform_indices = @transform_2, window_bounds = array<i64: 1, 128>}, {pipeline_mode = #tpu.pipeline_mode<synchronous>, transform_indices = @transform_3, window_bounds = array<i64: 128, 128>}, {pipeline_mode = #tpu.pipeline_mode<synchronous>, transform_indices = @transform_4, window_bounds = array<i64: 1, 128>}, {pipeline_mode = #tpu.pipeline_mode<synchronous>, transform_indices = @transform_5, window_bounds = array<i64: 128, 128>}, {pipeline_mode = #tpu.pipeline_mode<synchronous>, transform_indices = @transform_6, window_bounds = array<i64: 1, 128>}, {transform_indices = @transform_7, window_bounds = array<i64: 2, 128>}]} {
    %c0 = arith.constant 0 : index
    %c0_0 = arith.constant 0 : index
    %0 = vector.load %arg1[%c0, %c0_0] : memref<2x256xbf16, #tpu.memory_space<vmem>>, vector<2x256xbf16>
    %c0_1 = arith.constant 0 : index
    %c0_2 = arith.constant 0 : index
    %1 = vector.load %arg2[%c0_1, %c0_2] : memref<256x128xbf16, #tpu.memory_space<vmem>>, vector<256x128xbf16>
    %cst = arith.constant dense<0.000000e+00> : vector<2x128xf32>
    %2 = tpu.matmul %0, %1, %cst {dimension_numbers = #tpu.dot_dimension_numbers<[1], [0], [0], [1], [0, 0, 1, 1], [], []>} : vector<2x256xbf16>, vector<256x128xbf16>, vector<2x128xf32> -> vector<2x128xf32>
    %c0_3 = arith.constant 0 : index
    %c0_4 = arith.constant 0 : index
    %3 = vector.load %arg3[%c0_3, %c0_4] : memref<1x128xf32, #tpu.memory_space<vmem>>, vector<1x128xf32>
    %4 = vector.broadcast %3 : vector<1x128xf32> to vector<2x128xf32>
    %5 = arith.addf %2, %4 : vector<2x128xf32>
    %6 = arith.mulf %5, %5 : vector<2x128xf32>
    %7 = arith.truncf %6 : vector<2x128xf32> to vector<2x128xbf16>
    %c0_5 = arith.constant 0 : index
    %c0_6 = arith.constant 0 : index
    %8 = vector.load %arg4[%c0_5, %c0_6] : memref<128x128xbf16, #tpu.memory_space<vmem>>, vector<128x128xbf16>
    %cst_7 = arith.constant dense<0.000000e+00> : vector<2x128xf32>
    %9 = tpu.matmul %7, %8, %cst_7 {dimension_numbers = #tpu.dot_dimension_numbers<[1], [0], [0], [1], [0, 0, 1, 1], [], []>} : vector<2x128xbf16>, vector<128x128xbf16>, vector<2x128xf32> -> vector<2x128xf32>
    %c0_8 = arith.constant 0 : index
    %c0_9 = arith.constant 0 : index
    %10 = vector.load %arg5[%c0_8, %c0_9] : memref<1x128xf32, #tpu.memory_space<vmem>>, vector<1x128xf32>
    %11 = vector.broadcast %10 : vector<1x128xf32> to vector<2x128xf32>
    %12 = arith.addf %9, %11 : vector<2x128xf32>
    %13 = arith.mulf %12, %12 : vector<2x128xf32>
    %14 = arith.truncf %13 : vector<2x128xf32> to vector<2x128xbf16>
    %c0_10 = arith.constant 0 : index
    %c0_11 = arith.constant 0 : index
    %15 = vector.load %arg6[%c0_10, %c0_11] : memref<128x128xbf16, #tpu.memory_space<vmem>>, vector<128x128xbf16>
    %cst_12 = arith.constant dense<0.000000e+00> : vector<2x128xf32>
    %16 = tpu.matmul %14, %15, %cst_12 {dimension_numbers = #tpu.dot_dimension_numbers<[1], [0], [0], [1], [0, 0, 1, 1], [], []>} : vector<2x128xbf16>, vector<128x128xbf16>, vector<2x128xf32> -> vector<2x128xf32>
    %c0_13 = arith.constant 0 : index
    %c0_14 = arith.constant 0 : index
    %17 = vector.load %arg7[%c0_13, %c0_14] : memref<1x128xf32, #tpu.memory_space<vmem>>, vector<1x128xf32>
    %18 = vector.broadcast %17 : vector<1x128xf32> to vector<2x128xf32>
    %19 = arith.addf %16, %18 : vector<2x128xf32>
    %c0_15 = arith.constant 0 : index
    %c0_16 = arith.constant 0 : index
    %20 = vector.load %arg8[%c0_15, %c0_16] : memref<2x128xf32, #tpu.memory_space<vmem>>, vector<2x128xf32>
    tpu.vector_store %arg8[%c0_15, %c0_16], %19 {strides = array<i32>} : memref<2x128xf32, #tpu.memory_space<vmem>>, vector<2x128xf32>,
    return
  }
  func.func @transform_0(%arg0: i32) -> (i32, i32) {
    %c0_i32 = arith.constant 0 : i32
    %c0_i32_0 = arith.constant 0 : i32
    return %arg0, %c0_i32 : i32, i32
  }
  func.func @transform_1(%arg0: i32) -> (i32, i32) {
    %c0_i32 = arith.constant 0 : i32
    %c0_i32_0 = arith.constant 0 : i32
    %c0_i32_1 = arith.constant 0 : i32
    return %c0_i32, %c0_i32_0 : i32, i32
  }
  func.func @transform_2(%arg0: i32) -> (i32, i32) {
    %c0_i32 = arith.constant 0 : i32
    %c0_i32_0 = arith.constant 0 : i32
    %c0_i32_1 = arith.constant 0 : i32
    return %c0_i32, %c0_i32_0 : i32, i32
  }
  func.func @transform_3(%arg0: i32) -> (i32, i32) {
    %c0_i32 = arith.constant 0 : i32
    %c0_i32_0 = arith.constant 0 : i32
    %c0_i32_1 = arith.constant 0 : i32
    return %c0_i32, %c0_i32_0 : i32, i32
  }
  func.func @transform_4(%arg0: i32) -> (i32, i32) {
    %c0_i32 = arith.constant 0 : i32
    %c0_i32_0 = arith.constant 0 : i32
    %c0_i32_1 = arith.constant 0 : i32
    return %c0_i32, %c0_i32_0 : i32, i32
  }
  func.func @transform_5(%arg0: i32) -> (i32, i32) {
    %c0_i32 = arith.constant 0 : i32
    %c0_i32_0 = arith.constant 0 : i32
    %c0_i32_1 = arith.constant 0 : i32
    return %c0_i32, %c0_i32_0 : i32, i32
  }
  func.func @transform_6(%arg0: i32) -> (i32, i32) {
    %c0_i32 = arith.constant 0 : i32
    %c0_i32_0 = arith.constant 0 : i32
    %c0_i32_1 = arith.constant 0 : i32
    return %c0_i32, %c0_i32_0 : i32, i32
  }
  func.func @transform_7(%arg0: i32) -> (i32, i32) {
    %c0_i32 = arith.constant 0 : i32
    %c0_i32_0 = arith.constant 0 : i32
    return %arg0, %c0_i32 : i32, i32
  }
}

</mosaic_0001>

<llo_original>
// kernel: square_lenet_forward.3
$region0: #{square_lenet_forward.3}
  #allocation0 [shape = 'u32[]', space=smem, size = 0x4, offset = 0x4, fixed_abs, tag = 'smem constant byte address 0x4 - core index']
  #allocation1 [shape = 'u32[144,128]{1,0:T(1,128)}', space=vmem, size = 0x12000, scoped, tag = 'internal scratch']
  %s0 = inlined_call_operand.vmem [shape: bf16[4,288,25], index: 0, kind: input, shape index: {}]
  %s1 = inlined_call_operand.vmem [shape: bf16[25,128], index: 1, kind: input, shape index: {}]
  %s2 = inlined_call_operand.vmem [shape: f32[1,128], index: 2, kind: input, shape index: {}]
  %s3 = inlined_call_operand.vmem [shape: f32[288,128], index: 3, kind: output, shape index: {}]
  %s4 = sld [smem:[#allocation0]]
  $region22: #{square_lenet_forward.3} parent=0
    _
  %s6 = ssub.s32 1, %s4
  %s7 = scalar_select 0, %s6, %s4
  // Predicated region
  $region2: #{square_lenet_forward.3} parent=0 // pred_check
    _
  $region3: #{square_lenet_forward.3} parent=0 // pred_check_branch
    %9 = sbr.rel (0) target = $region5
  $region4: #{square_lenet_forward.3} parent=0 // pred_region
    _
  $region5: #{square_lenet_forward.3} parent=0 // pred_fallthru
    _
  // Predicated region
  $region6: #{square_lenet_forward.3} parent=0 // pred_check
    _
  $region7: #{square_lenet_forward.3} parent=0 // pred_check_branch
    %11 = sbr.rel (0) target = $region9
  $region8: #{square_lenet_forward.3} parent=0 // pred_region
    _
  $region9: #{square_lenet_forward.3} parent=0 // pred_fallthru
    _
  // Predicated region
  $region10: #{square_lenet_forward.3} parent=0 // pred_check
    _
  $region11: #{square_lenet_forward.3} parent=0 // pred_check_branch
    %13 = sbr.rel (0) target = $region13
  $region12: #{square_lenet_forward.3} parent=0 // pred_region
    _
  $region13: #{square_lenet_forward.3} parent=0 // pred_fallthru
    _
  %v15 = vld [vmem:[%s1] sm:$0xf]
  %v16 = vld [vmem:[%s1 + $0x4] sm:$0xf]
  %v17 = vld [vmem:[%s1 + $0x8] sm:$0xf]
  %v18 = vld [vmem:[%s1 + $0xc] sm:$0x1]
  %v19 = vld [vmem:[%s2] sm:$0x1]
  %v20 = vld [vmem:[%s0] sm:$0xf]
  %v21 = vld [vmem:[%s0 + $0x4] sm:$0xf]
  %v22 = vld [vmem:[%s0 + $0x8] sm:$0xf]
  %v23 = vld [vmem:[%s0 + $0xc] sm:$0xf]
  %v24 = vld [vmem:[%s0 + $0x10] sm:$0xf]
  %v25 = vld [vmem:[%s0 + $0x14] sm:$0xf]
  %v26 = vld [vmem:[%s0 + $0x18] sm:$0xf]
  %v27 = vld [vmem:[%s0 + $0x1c] sm:$0xf]
  %v28 = vld [vmem:[%s0 + $0x20] sm:$0xf]
  %v29 = vld [vmem:[%s0 + $0x24] sm:$0xf]
  %v30 = vld [vmem:[%s0 + $0x28] sm:$0xf]
  %v31 = vld [vmem:[%s0 + $0x2c] sm:$0xf]
  %v32 = vld [vmem:[%s0 + $0x30] sm:$0xf]
  %v33 = vld [vmem:[%s0 + $0x34] sm:$0xf]
  %v34 = vld [vmem:[%s0 + $0x38] sm:$0xf]
  %v35 = vld [vmem:[%s0 + $0x3c] sm:$0xf]
  %v36 = vld [vmem:[%s0 + $0x40] sm:$0xf]
  %v37 = vld [vmem:[%s0 + $0x44] sm:$0xf]
  %v38 = vld [vmem:[%s0 + $0x48] sm:$0xf]
  %v39 = vld [vmem:[%s0 + $0x4c] sm:$0xf]
  %v40 = vld [vmem:[%s0 + $0x50] sm:$0xf]
  %v41 = vld [vmem:[%s0 + $0x54] sm:$0xf]
  %v42 = vld [vmem:[%s0 + $0x58] sm:$0xf]
  %v43 = vld [vmem:[%s0 + $0x5c] sm:$0xf]
  %v44 = vld [vmem:[%s0 + $0x60] sm:$0xf]
  %v45 = vld [vmem:[%s0 + $0x64] sm:$0xf]
  %v46 = vld [vmem:[%s0 + $0x68] sm:$0xf]
  %v47 = vld [vmem:[%s0 + $0x6c] sm:$0xf]
  %v48 = vld [vmem:[%s0 + $0x70] sm:$0xf]
  %v49 = vld [vmem:[%s0 + $0x74] sm:$0xf]
  %v50 = vld [vmem:[%s0 + $0x78] sm:$0xf]
  %v51 = vld [vmem:[%s0 + $0x7c] sm:$0xf]
  %v52 = vld [vmem:[%s0 + $0x80] sm:$0xf]
  %v53 = vld [vmem:[%s0 + $0x84] sm:$0xf]
  %v54 = vld [vmem:[%s0 + $0x88] sm:$0xf]
  %v55 = vld [vmem:[%s0 + $0x8c] sm:$0xf]
  %v57 = vlaneseq
  %v58 = vshrl.u32 %v57, 7
  %v59 = vsub.s32 0, %v58
  %v60 = vrot.slane %v19, %v59
  %v98 = vunpack.c.l.b16 %v20
  %v99 = vunpack.c.l.b16 %v21
  %v100 = vunpack.c.l.b16 %v22
  %v101 = vunpack.c.l.b16 %v23
  %v102 = vunpack.c.l.b16 %v24
  %v103 = vunpack.c.l.b16 %v25
  %v104 = vunpack.c.l.b16 %v26
  %v105 = vunpack.c.l.b16 %v27
  %v106 = vunpack.c.l.b16 %v28
  %v107 = vunpack.c.l.b16 %v29
  %v108 = vunpack.c.l.b16 %v30
  %v109 = vunpack.c.l.b16 %v31
  %v110 = vunpack.c.l.b16 %v32
  %v111 = vunpack.c.l.b16 %v33
  %v112 = vunpack.c.l.b16 %v34
  %v113 = vunpack.c.l.b16 %v35
  %v114 = vunpack.c.l.b16 %v36
  %v115 = vunpack.c.l.b16 %v37
  %v116 = vunpack.c.l.b16 %v38
  %v117 = vunpack.c.l.b16 %v39
  %v118 = vunpack.c.l.b16 %v40
  %v119 = vunpack.c.l.b16 %v41
  %v120 = vunpack.c.l.b16 %v42
  %v121 = vunpack.c.l.b16 %v43
  %v122 = vunpack.c.l.b16 %v44
  %v123 = vunpack.c.l.b16 %v45
  %v124 = vunpack.c.l.b16 %v46
  %v125 = vunpack.c.l.b16 %v47
  %v126 = vunpack.c.l.b16 %v48
  %v127 = vunpack.c.l.b16 %v49
  %v128 = vunpack.c.l.b16 %v50
  %v129 = vunpack.c.l.b16 %v51
  %v130 = vunpack.c.l.b16 %v52
  %v131 = vunpack.c.l.b16 %v53
  %v132 = vunpack.c.l.b16 %v54
  %v133 = vunpack.c.l.b16 %v55
  %v134 = vpack.c.b16 %v99, %v98
  %v135 = vpack.c.b16 %v101, %v100
  %v136 = vpack.c.b16 %v103, %v102
  %v137 = vpack.c.b16 %v105, %v104
  %v138 = vpack.c.b16 %v107, %v106
  %v139 = vpack.c.b16 %v109, %v108
  %v140 = vpack.c.b16 %v111, %v110
  %v141 = vpack.c.b16 %v113, %v112
  %v142 = vpack.c.b16 %v115, %v114
  %v143 = vpack.c.b16 %v117, %v116
  %v144 = vpack.c.b16 %v119, %v118
  %v145 = vpack.c.b16 %v121, %v120
  %v146 = vpack.c.b16 %v123, %v122
  %v147 = vpack.c.b16 %v125, %v124
  %v148 = vpack.c.b16 %v127, %v126
  %v149 = vpack.c.b16 %v129, %v128
  %v150 = vpack.c.b16 %v131, %v130
  %v151 = vpack.c.b16 %v133, %v132
  %v156 = vunpack.c.l.b16 %v15
  %v157 = vunpack.c.l.b16 %v16
  %v158 = vunpack.c.l.b16 %v17
  %v159 = vunpack.c.l.b16 %v18
  %v160 = vpack.c.b16 %v157, %v156
  %v161 = vpack.c.b16 %v159, %v158
  %vm163 = vcmask 203776
  %v165 = vsel %vm163, %v134, 0
  %v168 = vsel %vm163, %v135, 0
  %v171 = vsel %vm163, %v136, 0
  %v174 = vsel %vm163, %v137, 0
  %v177 = vsel %vm163, %v138, 0
  %v180 = vsel %vm163, %v139, 0
  %v183 = vsel %vm163, %v140, 0
  %v186 = vsel %vm163, %v141, 0
  %v189 = vsel %vm163, %v142, 0
  %v192 = vsel %vm163, %v143, 0
  %v195 = vsel %vm163, %v144, 0
  %v198 = vsel %vm163, %v145, 0
  %v201 = vsel %vm163, %v146, 0
  %v204 = vsel %vm163, %v147, 0
  %v207 = vsel %vm163, %v148, 0
  %v210 = vsel %vm163, %v149, 0
  %v213 = vsel %vm163, %v150, 0
  %v216 = vsel %vm163, %v151, 0
  %vm218 = vcmask 1043456
  %vm219 = vcmask 1044480
  %v220 = vsel %vm218, 4294967295, 65535
  %v221 = vsel %vm219, %v220, 0
  %v223 = vand.u32 %v161, %v221
  %225 = vmatprep.subr.bf16.mxu0 0
  %226 = vmatpush1.bf16.msra.mxu0 0
  %227 = vmatprep.subr.bf16.mxu0 0
  %228 = vmatpush1.bf16.msra.mxu0 0
  %229 = vmatprep.subr.bf16.mxu0 0
  %230 = vmatpush1.bf16.msra.mxu0 0
  %231 = vmatprep.subr.bf16.mxu0 0
  %232 = vmatpush1.bf16.msra.mxu0 0
  %233 = vmatprep.subr.bf16.mxu0 0
  %234 = vmatpush1.bf16.msra.mxu0 0
  %235 = vmatprep.subr.bf16.mxu0 0
  %236 = vmatpush1.bf16.msra.mxu0 0
  %237 = vmatprep.subr.bf16.mxu0 0
  %238 = vmatpush1.bf16.msra.mxu0 %v223
  %239 = vmatprep.subr.bf16.mxu0 0
  %240 = vmatpush1.bf16.msra.mxu0 %v160
  %241 = vmatprep.subr.bf16.mxu0 0
  %242 = vmatpush2.bf16.msra.mxu0 0
  %243 = vmatprep.subr.bf16.mxu0 0
  %244 = vmatpush2.bf16.msra.mxu0 0
  %245 = vmatprep.subr.bf16.mxu0 0
  %246 = vmatpush2.bf16.msra.mxu0 0
  %247 = vmatprep.subr.bf16.mxu0 0
  %248 = vmatpush2.bf16.msra.mxu0 0
  %249 = vmatprep.subr.bf16.mxu0 0
  %250 = vmatpush2.bf16.msra.mxu0 0
  %251 = vmatprep.subr.bf16.mxu0 0
  %252 = vmatpush2.bf16.msra.mxu0 0
  %253 = vmatprep.subr.bf16.mxu0 0
  %254 = vmatpush2.bf16.msra.mxu0 0
  %255 = vmatprep.subr.bf16.mxu0 0
  %256 = vmatpush2.bf16.msra.mxu0 0
  %257 = vmatprep.mubr.bf16.mxu0 0
  %258 = vmatmul.mubr.bf16.gmra.mxu0 %v165
  %v259 = vpop.f32.mrf.mxu0
  %v260 = vadd.f32 %v60, %v259
  %v261 = vpop.f32.mrf.mxu0
  %v262 = vpop.f32.mrf.mxu0
  %v263 = vadd.f32 %v60, %v262
  %v264 = vpop.f32.mrf.mxu0
  %265 = vmatprep.mubr.bf16.mxu0 0
  %266 = vmatmul.mubr.bf16.gmra.mxu0 %v168
  %v267 = vpop.f32.mrf.mxu0
  %v268 = vadd.f32 %v60, %v267
  %v269 = vpop.f32.mrf.mxu0
  %v270 = vpop.f32.mrf.mxu0
  %v271 = vadd.f32 %v60, %v270
  %v272 = vpop.f32.mrf.mxu0
  %273 = vmatprep.mubr.bf16.mxu0 0
  %274 = vmatmul.mubr.bf16.gmra.mxu0 %v171
  %v275 = vpop.f32.mrf.mxu0
  %v276 = vadd.f32 %v60, %v275
  %v277 = vpop.f32.mrf.mxu0
  %v278 = vpop.f32.mrf.mxu0
  %v279 = vadd.f32 %v60, %v278
  %v280 = vpop.f32.mrf.mxu0
  %281 = vmatprep.mubr.bf16.mxu0 0
  %282 = vmatmul.mubr.bf16.gmra.mxu0 %v174
  %v283 = vpop.f32.mrf.mxu0
  %v284 = vadd.f32 %v60, %v283
  %v285 = vpop.f32.mrf.mxu0
  %v286 = vpop.f32.mrf.mxu0
  %v287 = vadd.f32 %v60, %v286
  %v288 = vpop.f32.mrf.mxu0
  %289 = vmatprep.mubr.bf16.mxu0 0
  %290 = vmatmul.mubr.bf16.gmra.mxu0 %v177
  %v291 = vpop.f32.mrf.mxu0
  %v292 = vadd.f32 %v60, %v291
  %v293 = vpop.f32.mrf.mxu0
  %v294 = vpop.f32.mrf.mxu0
  %v295 = vadd.f32 %v60, %v294
  %v296 = vpop.f32.mrf.mxu0
  %297 = vmatprep.mubr.bf16.mxu0 0
  %298 = vmatmul.mubr.bf16.gmra.mxu0 %v180
  %v299 = vpop.f32.mrf.mxu0
  %v300 = vadd.f32 %v60, %v299
  %v301 = vpop.f32.mrf.mxu0
  %v302 = vpop.f32.mrf.mxu0
  %v303 = vadd.f32 %v60, %v302
  %v304 = vpop.f32.mrf.mxu0
  %305 = vmatprep.mubr.bf16.mxu0 0
  %306 = vmatmul.mubr.bf16.gmra.mxu0 %v183
  %v307 = vpop.f32.mrf.mxu0
  %v308 = vadd.f32 %v60, %v307
  %v309 = vpop.f32.mrf.mxu0
  %v310 = vpop.f32.mrf.mxu0
  %v311 = vadd.f32 %v60, %v310
  %v312 = vpop.f32.mrf.mxu0
  %313 = vmatprep.mubr.bf16.mxu0 0
  %314 = vmatmul.mubr.bf16.gmra.mxu0 %v186
  %v315 = vpop.f32.mrf.mxu0
  %v316 = vadd.f32 %v60, %v315
  %v317 = vpop.f32.mrf.mxu0
  %v318 = vpop.f32.mrf.mxu0
  %v319 = vadd.f32 %v60, %v318
  %v320 = vpop.f32.mrf.mxu0
  %321 = vmatprep.mubr.bf16.mxu0 0
  %322 = vmatmul.mubr.bf16.gmra.mxu0 %v189
  %v323 = vpop.f32.mrf.mxu0
  %v324 = vadd.f32 %v60, %v323
  %v325 = vpop.f32.mrf.mxu0
  %v326 = vpop.f32.mrf.mxu0
  %v327 = vadd.f32 %v60, %v326
  %v328 = vpop.f32.mrf.mxu0
  %329 = vmatprep.mubr.bf16.mxu0 0
  %330 = vmatmul.mubr.bf16.gmra.mxu0 %v192
  %v331 = vpop.f32.mrf.mxu0
  %v332 = vadd.f32 %v60, %v331
  %v333 = vpop.f32.mrf.mxu0
  %v334 = vpop.f32.mrf.mxu0
  %v335 = vadd.f32 %v60, %v334
  %v336 = vpop.f32.mrf.mxu0
  %337 = vmatprep.mubr.bf16.mxu0 0
  %338 = vmatmul.mubr.bf16.gmra.mxu0 %v195
  %v339 = vpop.f32.mrf.mxu0
  %v340 = vadd.f32 %v60, %v339
  %v341 = vpop.f32.mrf.mxu0
  %v342 = vpop.f32.mrf.mxu0
  %v343 = vadd.f32 %v60, %v342
  %v344 = vpop.f32.mrf.mxu0
  %345 = vmatprep.mubr.bf16.mxu0 0
  %346 = vmatmul.mubr.bf16.gmra.mxu0 %v198
  %v347 = vpop.f32.mrf.mxu0
  %v348 = vadd.f32 %v60, %v347
  %v349 = vpop.f32.mrf.mxu0
  %v350 = vpop.f32.mrf.mxu0
  %v351 = vadd.f32 %v60, %v350
  %v352 = vpop.f32.mrf.mxu0
  %353 = vmatprep.mubr.bf16.mxu0 0
  %354 = vmatmul.mubr.bf16.gmra.mxu0 %v201
  %v355 = vpop.f32.mrf.mxu0
  %v356 = vadd.f32 %v60, %v355
  %v357 = vpop.f32.mrf.mxu0
  %v358 = vpop.f32.mrf.mxu0
  %v359 = vadd.f32 %v60, %v358
  %v360 = vpop.f32.mrf.mxu0
  %361 = vmatprep.mubr.bf16.mxu0 0
  %362 = vmatmul.mubr.bf16.gmra.mxu0 %v204
  %v363 = vpop.f32.mrf.mxu0
  %v364 = vadd.f32 %v60, %v363
  %v365 = vpop.f32.mrf.mxu0
  %v366 = vpop.f32.mrf.mxu0
  %v367 = vadd.f32 %v60, %v366
  %v368 = vpop.f32.mrf.mxu0
  %369 = vmatprep.mubr.bf16.mxu0 0
  %370 = vmatmul.mubr.bf16.gmra.mxu0 %v207
  %v371 = vpop.f32.mrf.mxu0
  %v372 = vadd.f32 %v60, %v371
  %v373 = vpop.f32.mrf.mxu0
  %v374 = vpop.f32.mrf.mxu0
  %v375 = vadd.f32 %v60, %v374
  %v376 = vpop.f32.mrf.mxu0
  %377 = vmatprep.mubr.bf16.mxu0 0
  %378 = vmatmul.mubr.bf16.gmra.mxu0 %v210
  %v379 = vpop.f32.mrf.mxu0
  %v380 = vadd.f32 %v60, %v379
  %v381 = vpop.f32.mrf.mxu0
  %v382 = vpop.f32.mrf.mxu0
  %v383 = vadd.f32 %v60, %v382
  %v384 = vpop.f32.mrf.mxu0
  %385 = vmatprep.mubr.bf16.mxu0 0
  %386 = vmatmul.mubr.bf16.gmra.mxu0 %v213
  %v387 = vpop.f32.mrf.mxu0
  %v388 = vadd.f32 %v60, %v387
  %v389 = vpop.f32.mrf.mxu0
  %v390 = vpop.f32.mrf.mxu0
  %v391 = vadd.f32 %v60, %v390
  %v392 = vpop.f32.mrf.mxu0
  %393 = vmatprep.mubr.bf16.mxu0 0
  %394 = vmatmul.mubr.bf16.gmra.mxu0 %v216
  %v395 = vpop.f32.mrf.mxu0
  %v396 = vadd.f32 %v60, %v395
  %v397 = vpop.f32.mrf.mxu0
  %v398 = vpop.f32.mrf.mxu0
  %v399 = vadd.f32 %v60, %v398
  %v400 = vpop.f32.mrf.mxu0
  %401 = vdwg.mxu0
  %v402 = vmul.f32 %v260, %v260
  %v403 = vmul.f32 %v263, %v263
  %v404 = vmul.f32 %v268, %v268
  %v405 = vmul.f32 %v271, %v271
  %v406 = vmul.f32 %v276, %v276
  %v407 = vmul.f32 %v279, %v279
  %v408 = vmul.f32 %v284, %v284
  %v409 = vmul.f32 %v287, %v287
  %v410 = vmul.f32 %v292, %v292
  %v411 = vmul.f32 %v295, %v295
  %v412 = vmul.f32 %v300, %v300
  %v413 = vmul.f32 %v303, %v303
  %v414 = vmul.f32 %v308, %v308
  %v415 = vmul.f32 %v311, %v311
  %v416 = vmul.f32 %v316, %v316
  %v417 = vmul.f32 %v319, %v319
  %v418 = vmul.f32 %v324, %v324
  %v419 = vmul.f32 %v327, %v327
  %v420 = vmul.f32 %v332, %v332
  %v421 = vmul.f32 %v335, %v335
  %v422 = vmul.f32 %v340, %v340
  %v423 = vmul.f32 %v343, %v343
  %v424 = vmul.f32 %v348, %v348
  %v425 = vmul.f32 %v351, %v351
  %v426 = vmul.f32 %v356, %v356
  %v427 = vmul.f32 %v359, %v359
  %v428 = vmul.f32 %v364, %v364
  %v429 = vmul.f32 %v367, %v367
  %v430 = vmul.f32 %v372, %v372
  %v431 = vmul.f32 %v375, %v375
  %v432 = vmul.f32 %v380, %v380
  %v433 = vmul.f32 %v383, %v383
  %v434 = vmul.f32 %v388, %v388
  %v435 = vmul.f32 %v391, %v391
  %v436 = vmul.f32 %v396, %v396
  %v437 = vmul.f32 %v399, %v399
  %s438 = scalar_lea.vmem %s0, 144
  %v439 = vld [vmem:[%s438] sm:$0xf]
  %v440 = vld [vmem:[%s438 + $0x4] sm:$0xf]
  %v441 = vld [vmem:[%s438 + $0x8] sm:$0xf]
  %v442 = vld [vmem:[%s438 + $0xc] sm:$0xf]
  %v443 = vld [vmem:[%s438 + $0x10] sm:$0xf]
  %v444 = vld [vmem:[%s438 + $0x14] sm:$0xf]
  %v445 = vld [vmem:[%s438 + $0x18] sm:$0xf]
  %v446 = vld [vmem:[%s438 + $0x1c] sm:$0xf]
  %v447 = vld [vmem:[%s438 + $0x20] sm:$0xf]
  %v448 = vld [vmem:[%s438 + $0x24] sm:$0xf]
  %v449 = vld [vmem:[%s438 + $0x28] sm:$0xf]
  %v450 = vld [vmem:[%s438 + $0x2c] sm:$0xf]
  %v451 = vld [vmem:[%s438 + $0x30] sm:$0xf]
  %v452 = vld [vmem:[%s438 + $0x34] sm:$0xf]
  %v453 = vld [vmem:[%s438 + $0x38] sm:$0xf]
  %v454 = vld [vmem:[%s438 + $0x3c] sm:$0xf]
  %v455 = vld [vmem:[%s438 + $0x40] sm:$0xf]
  %v456 = vld [vmem:[%s438 + $0x44] sm:$0xf]
  %v457 = vld [vmem:[%s438 + $0x48] sm:$0xf]
  %v458 = vld [vmem:[%s438 + $0x4c] sm:$0xf]
  %v459 = vld [vmem:[%s438 + $0x50] sm:$0xf]
  %v460 = vld [vmem:[%s438 + $0x54] sm:$0xf]
  %v461 = vld [vmem:[%s438 + $0x58] sm:$0xf]
  %v462 = vld [vmem:[%s438 + $0x5c] sm:$0xf]
  %v463 = vld [vmem:[%s438 + $0x60] sm:$0xf]
  %v464 = vld [vmem:[%s438 + $0x64] sm:$0xf]
  %v465 = vld [vmem:[%s438 + $0x68] sm:$0xf]
  %v466 = vld [vmem:[%s438 + $0x6c] sm:$0xf]
  %v467 = vld [vmem:[%s438 + $0x70] sm:$0xf]
  %v468 = vld [vmem:[%s438 + $0x74] sm:$0xf]
  %v469 = vld [vmem:[%s438 + $0x78] sm:$0xf]
  %v470 = vld [vmem:[%s438 + $0x7c] sm:$0xf]
  %v471 = vld [vmem:[%s438 + $0x80] sm:$0xf]
  %v472 = vld [vmem:[%s438 + $0x84] sm:$0xf]
  %v473 = vld [vmem:[%s438 + $0x88] sm:$0xf]
  %v474 = vld [vmem:[%s438 + $0x8c] sm:$0xf]
  %v511 = vunpack.c.l.b16 %v439
  %v512 = vunpack.c.l.b16 %v440
  %v513 = vunpack.c.l.b16 %v441
  %v514 = vunpack.c.l.b16 %v442
  %v515 = vunpack.c.l.b16 %v443
  %v516 = vunpack.c.l.b16 %v444
  %v517 = vunpack.c.l.b16 %v445
  %v518 = vunpack.c.l.b16 %v446
  %v519 = vunpack.c.l.b16 %v447
  %v520 = vunpack.c.l.b16 %v448
  %v521 = vunpack.c.l.b16 %v449
  %v522 = vunpack.c.l.b16 %v450
  %v523 = vunpack.c.l.b16 %v451
  %v524 = vunpack.c.l.b16 %v452
  %v525 = vunpack.c.l.b16 %v453
  %v526 = vunpack.c.l.b16 %v454
  %v527 = vunpack.c.l.b16 %v455
  %v528 = vunpack.c.l.b16 %v456
  %v529 = vunpack.c.l.b16 %v457
  %v530 = vunpack.c.l.b16 %v458
  %v531 = vunpack.c.l.b16 %v459
  %v532 = vunpack.c.l.b16 %v460
  %v533 = vunpack.c.l.b16 %v461
  %v534 = vunpack.c.l.b16 %v462
  %v535 = vunpack.c.l.b16 %v463
  %v536 = vunpack.c.l.b16 %v464
  %v537 = vunpack.c.l.b16 %v465
  %v538 = vunpack.c.l.b16 %v466
  %v539 = vunpack.c.l.b16 %v467
  %v540 = vunpack.c.l.b16 %v468
  %v541 = vunpack.c.l.b16 %v469
  %v542 = vunpack.c.l.b16 %v470
  %v543 = vunpack.c.l.b16 %v471
  %v544 = vunpack.c.l.b16 %v472
  %v545 = vunpack.c.l.b16 %v473
  %v546 = vunpack.c.l.b16 %v474
  %v547 = vpack.c.b16 %v512, %v511
  %v548 = vpack.c.b16 %v514, %v513
  %v549 = vpack.c.b16 %v516, %v515
  %v550 = vpack.c.b16 %v518, %v517
  %v551 = vpack.c.b16 %v520, %v519
  %v552 = vpack.c.b16 %v522, %v521
  %v553 = vpack.c.b16 %v524, %v523
  %v554 = vpack.c.b16 %v526, %v525
  %v555 = vpack.c.b16 %v528, %v527
  %v556 = vpack.c.b16 %v530, %v529
  %v557 = vpack.c.b16 %v532, %v531
  %v558 = vpack.c.b16 %v534, %v533
  %v559 = vpack.c.b16 %v536, %v535
  %v560 = vpack.c.b16 %v538, %v537
  %v561 = vpack.c.b16 %v540, %v539
  %v562 = vpack.c.b16 %v542, %v541
  %v563 = vpack.c.b16 %v544, %v543
  %v564 = vpack.c.b16 %v546, %v545
  %v566 = vsel %vm163, %v547, 0
  %v569 = vsel %vm163, %v548, 0
  %v572 = vsel %vm163, %v549, 0
  %v575 = vsel %vm163, %v550, 0
  %v578 = vsel %vm163, %v551, 0
  %v581 = vsel %vm163, %v552, 0
  %v584 = vsel %vm163, %v553, 0
  %v587 = vsel %vm163, %v554, 0
  %v590 = vsel %vm163, %v555, 0
  %v593 = vsel %vm163, %v556, 0
  %v596 = vsel %vm163, %v557, 0
  %v599 = vsel %vm163, %v558, 0
  %v602 = vsel %vm163, %v559, 0
  %v605 = vsel %vm163, %v560, 0
  %v608 = vsel %vm163, %v561, 0
  %v611 = vsel %vm163, %v562, 0
  %v614 = vsel %vm163, %v563, 0
  %v617 = vsel %vm163, %v564, 0
  %619 = vmatprep.subr.bf16.mxu0 0
  %620 = vmatpush1.bf16.msra.mxu0 0
  %621 = vmatprep.subr.bf16.mxu0 0
  %622 = vmatpush1.bf16.msra.mxu0 0
  %623 = vmatprep.subr.bf16.mxu0 0
  %624 = vmatpush1.bf16.msra.mxu0 0
  %625 = vmatprep.subr.bf16.mxu0 0
  %626 = vmatpush1.bf16.msra.mxu0 0
  %627 = vmatprep.subr.bf16.mxu0 0
  %628 = vmatpush1.bf16.msra.mxu0 0
  %629 = vmatprep.subr.bf16.mxu0 0
  %630 = vmatpush1.bf16.msra.mxu0 0
  %631 = vmatprep.subr.bf16.mxu0 0
  %632 = vmatpush1.bf16.msra.mxu0 %v223
  %633 = vmatprep.subr.bf16.mxu0 0
  %634 = vmatpush1.bf16.msra.mxu0 %v160
  %635 = vmatprep.subr.bf16.mxu0 0
  %636 = vmatpush2.bf16.msra.mxu0 0
  %637 = vmatprep.subr.bf16.mxu0 0
  %638 = vmatpush2.bf16.msra.mxu0 0
  %639 = vmatprep.subr.bf16.mxu0 0
  %640 = vmatpush2.bf16.msra.mxu0 0
  %641 = vmatprep.subr.bf16.mxu0 0
  %642 = vmatpush2.bf16.msra.mxu0 0
  %643 = vmatprep.subr.bf16.mxu0 0
  %644 = vmatpush2.bf16.msra.mxu0 0
  %645 = vmatprep.subr.bf16.mxu0 0
  %646 = vmatpush2.bf16.msra.mxu0 0
  %647 = vmatprep.subr.bf16.mxu0 0
  %648 = vmatpush2.bf16.msra.mxu0 0
  %649 = vmatprep.subr.bf16.mxu0 0
  %650 = vmatpush2.bf16.msra.mxu0 0
  %651 = vmatprep.mubr.bf16.mxu0 0
  %652 = vmatmul.mubr.bf16.gmra.mxu0 %v566
  %v653 = vpop.f32.mrf.mxu0
  %v654 = vadd.f32 %v60, %v653
  %v655 = vpop.f32.mrf.mxu0
  %v656 = vpop.f32.mrf.mxu0
  %v657 = vadd.f32 %v60, %v656
  %v658 = vpop.f32.mrf.mxu0
  %659 = vmatprep.mubr.bf16.mxu0 0
  %660 = vmatmul.mubr.bf16.gmra.mxu0 %v569
  %v661 = vpop.f32.mrf.mxu0
  %v662 = vadd.f32 %v60, %v661
  %v663 = vpop.f32.mrf.mxu0
  %v664 = vpop.f32.mrf.mxu0
  %v665 = vadd.f32 %v60, %v664
  %v666 = vpop.f32.mrf.mxu0
  %667 = vmatprep.mubr.bf16.mxu0 0
  %668 = vmatmul.mubr.bf16.gmra.mxu0 %v572
  %v669 = vpop.f32.mrf.mxu0
  %v670 = vadd.f32 %v60, %v669
  %v671 = vpop.f32.mrf.mxu0
  %v672 = vpop.f32.mrf.mxu0
  %v673 = vadd.f32 %v60, %v672
  %v674 = vpop.f32.mrf.mxu0
  %675 = vmatprep.mubr.bf16.mxu0 0
  %676 = vmatmul.mubr.bf16.gmra.mxu0 %v575
  %v677 = vpop.f32.mrf.mxu0
  %v678 = vadd.f32 %v60, %v677
  %v679 = vpop.f32.mrf.mxu0
  %v680 = vpop.f32.mrf.mxu0
  %v681 = vadd.f32 %v60, %v680
  %v682 = vpop.f32.mrf.mxu0
  %683 = vmatprep.mubr.bf16.mxu0 0
  %684 = vmatmul.mubr.bf16.gmra.mxu0 %v578
  %v685 = vpop.f32.mrf.mxu0
  %v686 = vadd.f32 %v60, %v685
  %v687 = vpop.f32.mrf.mxu0
  %v688 = vpop.f32.mrf.mxu0
  %v689 = vadd.f32 %v60, %v688
  %v690 = vpop.f32.mrf.mxu0
  %691 = vmatprep.mubr.bf16.mxu0 0
  %692 = vmatmul.mubr.bf16.gmra.mxu0 %v581
  %v693 = vpop.f32.mrf.mxu0
  %v694 = vadd.f32 %v60, %v693
  %v695 = vpop.f32.mrf.mxu0
  %v696 = vpop.f32.mrf.mxu0
  %v697 = vadd.f32 %v60, %v696
  %v698 = vpop.f32.mrf.mxu0
  %699 = vmatprep.mubr.bf16.mxu0 0
  %700 = vmatmul.mubr.bf16.gmra.mxu0 %v584
  %v701 = vpop.f32.mrf.mxu0
  %v702 = vadd.f32 %v60, %v701
  %v703 = vpop.f32.mrf.mxu0
  %v704 = vpop.f32.mrf.mxu0
  %v705 = vadd.f32 %v60, %v704
  %v706 = vpop.f32.mrf.mxu0
  %707 = vmatprep.mubr.bf16.mxu0 0
  %708 = vmatmul.mubr.bf16.gmra.mxu0 %v587
  %v709 = vpop.f32.mrf.mxu0
  %v710 = vadd.f32 %v60, %v709
  %v711 = vpop.f32.mrf.mxu0
  %v712 = vpop.f32.mrf.mxu0
  %v713 = vadd.f32 %v60, %v712
  %v714 = vpop.f32.mrf.mxu0
  %715 = vmatprep.mubr.bf16.mxu0 0
  %716 = vmatmul.mubr.bf16.gmra.mxu0 %v590
  %v717 = vpop.f32.mrf.mxu0
  %v718 = vadd.f32 %v60, %v717
  %v719 = vpop.f32.mrf.mxu0
  %v720 = vpop.f32.mrf.mxu0
  %v721 = vadd.f32 %v60, %v720
  %v722 = vpop.f32.mrf.mxu0
  %723 = vmatprep.mubr.bf16.mxu0 0
  %724 = vmatmul.mubr.bf16.gmra.mxu0 %v593
  %v725 = vpop.f32.mrf.mxu0
  %v726 = vadd.f32 %v60, %v725
  %v727 = vpop.f32.mrf.mxu0
  %v728 = vpop.f32.mrf.mxu0
  %v729 = vadd.f32 %v60, %v728
  %v730 = vpop.f32.mrf.mxu0
  %731 = vmatprep.mubr.bf16.mxu0 0
  %732 = vmatmul.mubr.bf16.gmra.mxu0 %v596
  %v733 = vpop.f32.mrf.mxu0
  %v734 = vadd.f32 %v60, %v733
  %v735 = vpop.f32.mrf.mxu0
  %v736 = vpop.f32.mrf.mxu0
  %v737 = vadd.f32 %v60, %v736
  %v738 = vpop.f32.mrf.mxu0
  %739 = vmatprep.mubr.bf16.mxu0 0
  %740 = vmatmul.mubr.bf16.gmra.mxu0 %v599
  %v741 = vpop.f32.mrf.mxu0
  %v742 = vadd.f32 %v60, %v741
  %v743 = vpop.f32.mrf.mxu0
  %v744 = vpop.f32.mrf.mxu0
  %v745 = vadd.f32 %v60, %v744
  %v746 = vpop.f32.mrf.mxu0
  %747 = vmatprep.mubr.bf16.mxu0 0
  %748 = vmatmul.mubr.bf16.gmra.mxu0 %v602
  %v749 = vpop.f32.mrf.mxu0
  %v750 = vadd.f32 %v60, %v749
  %v751 = vpop.f32.mrf.mxu0
  %v752 = vpop.f32.mrf.mxu0
  %v753 = vadd.f32 %v60, %v752
  %v754 = vpop.f32.mrf.mxu0
  %755 = vmatprep.mubr.bf16.mxu0 0
  %756 = vmatmul.mubr.bf16.gmra.mxu0 %v605
  %v757 = vpop.f32.mrf.mxu0
  %v758 = vadd.f32 %v60, %v757
  %v759 = vpop.f32.mrf.mxu0
  %v760 = vpop.f32.mrf.mxu0
  %v761 = vadd.f32 %v60, %v760
  %v762 = vpop.f32.mrf.mxu0
  %763 = vmatprep.mubr.bf16.mxu0 0
  %764 = vmatmul.mubr.bf16.gmra.mxu0 %v608
  %v765 = vpop.f32.mrf.mxu0
  %v766 = vadd.f32 %v60, %v765
  %v767 = vpop.f32.mrf.mxu0
  %v768 = vpop.f32.mrf.mxu0
  %v769 = vadd.f32 %v60, %v768
  %v770 = vpop.f32.mrf.mxu0
  %771 = vmatprep.mubr.bf16.mxu0 0
  %772 = vmatmul.mubr.bf16.gmra.mxu0 %v611
  %v773 = vpop.f32.mrf.mxu0
  %v774 = vadd.f32 %v60, %v773
  %v775 = vpop.f32.mrf.mxu0
  %v776 = vpop.f32.mrf.mxu0
  %v777 = vadd.f32 %v60, %v776
  %v778 = vpop.f32.mrf.mxu0
  %779 = vmatprep.mubr.bf16.mxu0 0
  %780 = vmatmul.mubr.bf16.gmra.mxu0 %v614
  %v781 = vpop.f32.mrf.mxu0
  %v782 = vadd.f32 %v60, %v781
  %v783 = vpop.f32.mrf.mxu0
  %v784 = vpop.f32.mrf.mxu0
  %v785 = vadd.f32 %v60, %v784
  %v786 = vpop.f32.mrf.mxu0
  %787 = vmatprep.mubr.bf16.mxu0 0
  %788 = vmatmul.mubr.bf16.gmra.mxu0 %v617
  %v789 = vpop.f32.mrf.mxu0
  %v790 = vadd.f32 %v60, %v789
  %v791 = vpop.f32.mrf.mxu0
  %v792 = vpop.f32.mrf.mxu0
  %v793 = vadd.f32 %v60, %v792
  %v794 = vpop.f32.mrf.mxu0
  %795 = vdwg.mxu0
  %v796 = vmul.f32 %v654, %v654
  %v797 = vmul.f32 %v657, %v657
  %v798 = vmul.f32 %v662, %v662
  %v799 = vmul.f32 %v665, %v665
  %v800 = vmul.f32 %v670, %v670
  %v801 = vmul.f32 %v673, %v673
  %v802 = vmul.f32 %v678, %v678
  %v803 = vmul.f32 %v681, %v681
  %v804 = vmul.f32 %v686, %v686
  %v805 = vmul.f32 %v689, %v689
  %v806 = vmul.f32 %v694, %v694
  %v807 = vmul.f32 %v697, %v697
  %v808 = vmul.f32 %v702, %v702
  %v809 = vmul.f32 %v705, %v705
  %v810 = vmul.f32 %v710, %v710
  %v811 = vmul.f32 %v713, %v713
  %v812 = vmul.f32 %v718, %v718
  %v813 = vmul.f32 %v721, %v721
  %v814 = vmul.f32 %v726, %v726
  %v815 = vmul.f32 %v729, %v729
  %v816 = vmul.f32 %v734, %v734
  %v817 = vmul.f32 %v737, %v737
  %v818 = vmul.f32 %v742, %v742
  %v819 = vmul.f32 %v745, %v745
  %v820 = vmul.f32 %v750, %v750
  %v821 = vmul.f32 %v753, %v753
  %v822 = vmul.f32 %v758, %v758
  %v823 = vmul.f32 %v761, %v761
  %v824 = vmul.f32 %v766, %v766
  %v825 = vmul.f32 %v769, %v769
  %v826 = vmul.f32 %v774, %v774
  %v827 = vmul.f32 %v777, %v777
  %v828 = vmul.f32 %v782, %v782
  %v829 = vmul.f32 %v785, %v785
  %v830 = vmul.f32 %v790, %v790
  %v831 = vmul.f32 %v793, %v793
  %v832 = vmax.f32 %v402, %v796
  %v833 = vmax.f32 %v403, %v797
  %v834 = vmax.f32 %v404, %v798
  %v835 = vmax.f32 %v405, %v799
  %v836 = vmax.f32 %v406, %v800
  %v837 = vmax.f32 %v407, %v801
  %v838 = vmax.f32 %v408, %v802
  %v839 = vmax.f32 %v409, %v803
  %v840 = vmax.f32 %v410, %v804
  %v841 = vmax.f32 %v411, %v805
  %v842 = vmax.f32 %v412, %v806
  %v843 = vmax.f32 %v413, %v807
  %v844 = vmax.f32 %v414, %v808
  %v845 = vmax.f32 %v415, %v809
  %v846 = vmax.f32 %v416, %v810
  %v847 = vmax.f32 %v417, %v811
  %v848 = vmax.f32 %v418, %v812
  %v849 = vmax.f32 %v419, %v813
  %v850 = vmax.f32 %v420, %v814
  %v851 = vmax.f32 %v421, %v815
  %v852 = vmax.f32 %v422, %v816
  %v853 = vmax.f32 %v423, %v817
  %v854 = vmax.f32 %v424, %v818
  %v855 = vmax.f32 %v425, %v819
  %v856 = vmax.f32 %v426, %v820
  %v857 = vmax.f32 %v427, %v821
  %v858 = vmax.f32 %v428, %v822
  %v859 = vmax.f32 %v429, %v823
  %v860 = vmax.f32 %v430, %v824
  %v861 = vmax.f32 %v431, %v825
  %v862 = vmax.f32 %v432, %v826
  %v863 = vmax.f32 %v433, %v827
  %v864 = vmax.f32 %v434, %v828
  %v865 = vmax.f32 %v435, %v829
  %v866 = vmax.f32 %v436, %v830
  %v867 = vmax.f32 %v437, %v831
  %s868 = scalar_lea.vmem %s0, 288
  %v869 = vld [vmem:[%s868] sm:$0xf]
  %v870 = vld [vmem:[%s868 + $0x4] sm:$0xf]
  %v871 = vld [vmem:[%s868 + $0x8] sm:$0xf]
  %v872 = vld [vmem:[%s868 + $0xc] sm:$0xf]
  %v873 = vld [vmem:[%s868 + $0x10] sm:$0xf]
  %v874 = vld [vmem:[%s868 + $0x14] sm:$0xf]
  %v875 = vld [vmem:[%s868 + $0x18] sm:$0xf]
  %v876 = vld [vmem:[%s868 + $0x1c] sm:$0xf]
  %v877 = vld [vmem:[%s868 + $0x20] sm:$0xf]
  %v878 = vld [vmem:[%s868 + $0x24] sm:$0xf]
  %v879 = vld [vmem:[%s868 + $0x28] sm:$0xf]
  %v880 = vld [vmem:[%s868 + $0x2c] sm:$0xf]
  %v881 = vld [vmem:[%s868 + $0x30] sm:$0xf]
  %v882 = vld [vmem:[%s868 + $0x34] sm:$0xf]
  %v883 = vld [vmem:[%s868 + $0x38] sm:$0xf]
  %v884 = vld [vmem:[%s868 + $0x3c] sm:$0xf]
  %v885 = vld [vmem:[%s868 + $0x40] sm:$0xf]
  %v886 = vld [vmem:[%s868 + $0x44] sm:$0xf]
  %v887 = vld [vmem:[%s868 + $0x48] sm:$0xf]
  %v888 = vld [vmem:[%s868 + $0x4c] sm:$0xf]
  %v889 = vld [vmem:[%s868 + $0x50] sm:$0xf]
  %v890 = vld [vmem:[%s868 + $0x54] sm:$0xf]
  %v891 = vld [vmem:[%s868 + $0x58] sm:$0xf]
  %v892 = vld [vmem:[%s868 + $0x5c] sm:$0xf]
  %v893 = vld [vmem:[%s868 + $0x60] sm:$0xf]
  %v894 = vld [vmem:[%s868 + $0x64] sm:$0xf]
  %v895 = vld [vmem:[%s868 + $0x68] sm:$0xf]
  %v896 = vld [vmem:[%s868 + $0x6c] sm:$0xf]
  %v897 = vld [vmem:[%s868 + $0x70] sm:$0xf]
  %v898 = vld [vmem:[%s868 + $0x74] sm:$0xf]
  %v899 = vld [vmem:[%s868 + $0x78] sm:$0xf]
  %v900 = vld [vmem:[%s868 + $0x7c] sm:$0xf]
  %v901 = vld [vmem:[%s868 + $0x80] sm:$0xf]
  %v902 = vld [vmem:[%s868 + $0x84] sm:$0xf]
  %v903 = vld [vmem:[%s868 + $0x88] sm:$0xf]
  %v904 = vld [vmem:[%s868 + $0x8c] sm:$0xf]
  %v941 = vunpack.c.l.b16 %v869
  %v942 = vunpack.c.l.b16 %v870
  %v943 = vunpack.c.l.b16 %v871
  %v944 = vunpack.c.l.b16 %v872
  %v945 = vunpack.c.l.b16 %v873
  %v946 = vunpack.c.l.b16 %v874
  %v947 = vunpack.c.l.b16 %v875
  %v948 = vunpack.c.l.b16 %v876
  %v949 = vunpack.c.l.b16 %v877
  %v950 = vunpack.c.l.b16 %v878
  %v951 = vunpack.c.l.b16 %v879
  %v952 = vunpack.c.l.b16 %v880
  %v953 = vunpack.c.l.b16 %v881
  %v954 = vunpack.c.l.b16 %v882
  %v955 = vunpack.c.l.b16 %v883
  %v956 = vunpack.c.l.b16 %v884
  %v957 = vunpack.c.l.b16 %v885
  %v958 = vunpack.c.l.b16 %v886
  %v959 = vunpack.c.l.b16 %v887
  %v960 = vunpack.c.l.b16 %v888
  %v961 = vunpack.c.l.b16 %v889
  %v962 = vunpack.c.l.b16 %v890
  %v963 = vunpack.c.l.b16 %v891
  %v964 = vunpack.c.l.b16 %v892
  %v965 = vunpack.c.l.b16 %v893
  %v966 = vunpack.c.l.b16 %v894
  %v967 = vunpack.c.l.b16 %v895
  %v968 = vunpack.c.l.b16 %v896
  %v969 = vunpack.c.l.b16 %v897
  %v970 = vunpack.c.l.b16 %v898
  %v971 = vunpack.c.l.b16 %v899
  %v972 = vunpack.c.l.b16 %v900
  %v973 = vunpack.c.l.b16 %v901
  %v974 = vunpack.c.l.b16 %v902
  %v975 = vunpack.c.l.b16 %v903
  %v976 = vunpack.c.l.b16 %v904
  %v977 = vpack.c.b16 %v942, %v941
  %v978 = vpack.c.b16 %v944, %v943
  %v979 = vpack.c.b16 %v946, %v945
  %v980 = vpack.c.b16 %v948, %v947
  %v981 = vpack.c.b16 %v950, %v949
  %v982 = vpack.c.b16 %v952, %v951
  %v983 = vpack.c.b16 %v954, %v953
  %v984 = vpack.c.b16 %v956, %v955
  %v985 = vpack.c.b16 %v958, %v957
  %v986 = vpack.c.b16 %v960, %v959
  %v987 = vpack.c.b16 %v962, %v961
  %v988 = vpack.c.b16 %v964, %v963
  %v989 = vpack.c.b16 %v966, %v965
  %v990 = vpack.c.b16 %v968, %v967
  %v991 = vpack.c.b16 %v970, %v969
  %v992 = vpack.c.b16 %v972, %v971
  %v993 = vpack.c.b16 %v974, %v973
  %v994 = vpack.c.b16 %v976, %v975
  %v996 = vsel %vm163, %v977, 0
  %v999 = vsel %vm163, %v978, 0
  %v1002 = vsel %vm163, %v979, 0
  %v1005 = vsel %vm163, %v980, 0
  %v1008 = vsel %vm163, %v981, 0
  %v1011 = vsel %vm163, %v982, 0
  %v1014 = vsel %vm163, %v983, 0
  %v1017 = vsel %vm163, %v984, 0
  %v1020 = vsel %vm163, %v985, 0
  %v1023 = vsel %vm163, %v986, 0
  %v1026 = vsel %vm163, %v987, 0
  %v1029 = vsel %vm163, %v988, 0
  %v1032 = vsel %vm163, %v989, 0
  %v1035 = vsel %vm163, %v990, 0
  %v1038 = vsel %vm163, %v991, 0
  %v1041 = vsel %vm163, %v992, 0
  %v1044 = vsel %vm163, %v993, 0
  %v1047 = vsel %vm163, %v994, 0
  %1049 = vmatprep.subr.bf16.mxu0 0
  %1050 = vmatpush1.bf16.msra.mxu0 0
  %1051 = vmatprep.subr.bf16.mxu0 0
  %1052 = vmatpush1.bf16.msra.mxu0 0
  %1053 = vmatprep.subr.bf16.mxu0 0
  %1054 = vmatpush1.bf16.msra.mxu0 0
  %1055 = vmatprep.subr.bf16.mxu0 0
  %1056 = vmatpush1.bf16.msra.mxu0 0
  %1057 = vmatprep.subr.bf16.mxu0 0
  %1058 = vmatpush1.bf16.msra.mxu0 0
  %1059 = vmatprep.subr.bf16.mxu0 0
  %1060 = vmatpush1.bf16.msra.mxu0 0
  %1061 = vmatprep.subr.bf16.mxu0 0
  %1062 = vmatpush1.bf16.msra.mxu0 %v223
  %1063 = vmatprep.subr.bf16.mxu0 0
  %1064 = vmatpush1.bf16.msra.mxu0 %v160
  %1065 = vmatprep.subr.bf16.mxu0 0
  %1066 = vmatpush2.bf16.msra.mxu0 0
  %1067 = vmatprep.subr.bf16.mxu0 0
  %1068 = vmatpush2.bf16.msra.mxu0 0
  %1069 = vmatprep.subr.bf16.mxu0 0
  %1070 = vmatpush2.bf16.msra.mxu0 0
  %1071 = vmatprep.subr.bf16.mxu0 0
  %1072 = vmatpush2.bf16.msra.mxu0 0
  %1073 = vmatprep.subr.bf16.mxu0 0
  %1074 = vmatpush2.bf16.msra.mxu0 0
  %1075 = vmatprep.subr.bf16.mxu0 0
  %1076 = vmatpush2.bf16.msra.mxu0 0
  %1077 = vmatprep.subr.bf16.mxu0 0
  %1078 = vmatpush2.bf16.msra.mxu0 0
  %1079 = vmatprep.subr.bf16.mxu0 0
  %1080 = vmatpush2.bf16.msra.mxu0 0
  %1081 = vmatprep.mubr.bf16.mxu0 0
  %1082 = vmatmul.mubr.bf16.gmra.mxu0 %v996
  %v1083 = vpop.f32.mrf.mxu0
  %v1084 = vadd.f32 %v60, %v1083
  %v1085 = vpop.f32.mrf.mxu0
  %v1086 = vpop.f32.mrf.mxu0
  %v1087 = vadd.f32 %v60, %v1086
  %v1088 = vpop.f32.mrf.mxu0
  %1089 = vmatprep.mubr.bf16.mxu0 0
  %1090 = vmatmul.mubr.bf16.gmra.mxu0 %v999
  %v1091 = vpop.f32.mrf.mxu0
  %v1092 = vadd.f32 %v60, %v1091
  %v1093 = vpop.f32.mrf.mxu0
  %v1094 = vpop.f32.mrf.mxu0
  %v1095 = vadd.f32 %v60, %v1094
  %v1096 = vpop.f32.mrf.mxu0
  %1097 = vmatprep.mubr.bf16.mxu0 0
  %1098 = vmatmul.mubr.bf16.gmra.mxu0 %v1002
  %v1099 = vpop.f32.mrf.mxu0
  %v1100 = vadd.f32 %v60, %v1099
  %v1101 = vpop.f32.mrf.mxu0
  %v1102 = vpop.f32.mrf.mxu0
  %v1103 = vadd.f32 %v60, %v1102
  %v1104 = vpop.f32.mrf.mxu0
  %1105 = vmatprep.mubr.bf16.mxu0 0
  %1106 = vmatmul.mubr.bf16.gmra.mxu0 %v1005
  %v1107 = vpop.f32.mrf.mxu0
  %v1108 = vadd.f32 %v60, %v1107
  %v1109 = vpop.f32.mrf.mxu0
  %v1110 = vpop.f32.mrf.mxu0
  %v1111 = vadd.f32 %v60, %v1110
  %v1112 = vpop.f32.mrf.mxu0
  %1113 = vmatprep.mubr.bf16.mxu0 0
  %1114 = vmatmul.mubr.bf16.gmra.mxu0 %v1008
  %v1115 = vpop.f32.mrf.mxu0
  %v1116 = vadd.f32 %v60, %v1115
  %v1117 = vpop.f32.mrf.mxu0
  %v1118 = vpop.f32.mrf.mxu0
  %v1119 = vadd.f32 %v60, %v1118
  %v1120 = vpop.f32.mrf.mxu0
  %1121 = vmatprep.mubr.bf16.mxu0 0
  %1122 = vmatmul.mubr.bf16.gmra.mxu0 %v1011
  %v1123 = vpop.f32.mrf.mxu0
  %v1124 = vadd.f32 %v60, %v1123
  %v1125 = vpop.f32.mrf.mxu0
  %v1126 = vpop.f32.mrf.mxu0
  %v1127 = vadd.f32 %v60, %v1126
  %v1128 = vpop.f32.mrf.mxu0
  %1129 = vmatprep.mubr.bf16.mxu0 0
  %1130 = vmatmul.mubr.bf16.gmra.mxu0 %v1014
  %v1131 = vpop.f32.mrf.mxu0
  %v1132 = vadd.f32 %v60, %v1131
  %v1133 = vpop.f32.mrf.mxu0
  %v1134 = vpop.f32.mrf.mxu0
  %v1135 = vadd.f32 %v60, %v1134
  %v1136 = vpop.f32.mrf.mxu0
  %1137 = vmatprep.mubr.bf16.mxu0 0
  %1138 = vmatmul.mubr.bf16.gmra.mxu0 %v1017
  %v1139 = vpop.f32.mrf.mxu0
  %v1140 = vadd.f32 %v60, %v1139
  %v1141 = vpop.f32.mrf.mxu0
  %v1142 = vpop.f32.mrf.mxu0
  %v1143 = vadd.f32 %v60, %v1142
  %v1144 = vpop.f32.mrf.mxu0
  %1145 = vmatprep.mubr.bf16.mxu0 0
  %1146 = vmatmul.mubr.bf16.gmra.mxu0 %v1020
  %v1147 = vpop.f32.mrf.mxu0
  %v1148 = vadd.f32 %v60, %v1147
  %v1149 = vpop.f32.mrf.mxu0
  %v1150 = vpop.f32.mrf.mxu0
  %v1151 = vadd.f32 %v60, %v1150
  %v1152 = vpop.f32.mrf.mxu0
  %1153 = vmatprep.mubr.bf16.mxu0 0
  %1154 = vmatmul.mubr.bf16.gmra.mxu0 %v1023
  %v1155 = vpop.f32.mrf.mxu0
  %v1156 = vadd.f32 %v60, %v1155
  %v1157 = vpop.f32.mrf.mxu0
  %v1158 = vpop.f32.mrf.mxu0
  %v1159 = vadd.f32 %v60, %v1158
  %v1160 = vpop.f32.mrf.mxu0
  %1161 = vmatprep.mubr.bf16.mxu0 0
  %1162 = vmatmul.mubr.bf16.gmra.mxu0 %v1026
  %v1163 = vpop.f32.mrf.mxu0
  %v1164 = vadd.f32 %v60, %v1163
  %v1165 = vpop.f32.mrf.mxu0
  %v1166 = vpop.f32.mrf.mxu0
  %v1167 = vadd.f32 %v60, %v1166
  %v1168 = vpop.f32.mrf.mxu0
  %1169 = vmatprep.mubr.bf16.mxu0 0
  %1170 = vmatmul.mubr.bf16.gmra.mxu0 %v1029
  %v1171 = vpop.f32.mrf.mxu0
  %v1172 = vadd.f32 %v60, %v1171
  %v1173 = vpop.f32.mrf.mxu0
  %v1174 = vpop.f32.mrf.mxu0
  %v1175 = vadd.f32 %v60, %v1174
  %v1176 = vpop.f32.mrf.mxu0
  %1177 = vmatprep.mubr.bf16.mxu0 0
  %1178 = vmatmul.mubr.bf16.gmra.mxu0 %v1032
  %v1179 = vpop.f32.mrf.mxu0
  %v1180 = vadd.f32 %v60, %v1179
  %v1181 = vpop.f32.mrf.mxu0
  %v1182 = vpop.f32.mrf.mxu0
  %v1183 = vadd.f32 %v60, %v1182
  %v1184 = vpop.f32.mrf.mxu0
  %1185 = vmatprep.mubr.bf16.mxu0 0
  %1186 = vmatmul.mubr.bf16.gmra.mxu0 %v1035
  %v1187 = vpop.f32.mrf.mxu0
  %v1188 = vadd.f32 %v60, %v1187
  %v1189 = vpop.f32.mrf.mxu0
  %v1190 = vpop.f32.mrf.mxu0
  %v1191 = vadd.f32 %v60, %v1190
  %v1192 = vpop.f32.mrf.mxu0
  %1193 = vmatprep.mubr.bf16.mxu0 0
  %1194 = vmatmul.mubr.bf16.gmra.mxu0 %v1038
  %v1195 = vpop.f32.mrf.mxu0
  %v1196 = vadd.f32 %v60, %v1195
  %v1197 = vpop.f32.mrf.mxu0
  %v1198 = vpop.f32.mrf.mxu0
  %v1199 = vadd.f32 %v60, %v1198
  %v1200 = vpop.f32.mrf.mxu0
  %1201 = vmatprep.mubr.bf16.mxu0 0
  %1202 = vmatmul.mubr.bf16.gmra.mxu0 %v1041
  %v1203 = vpop.f32.mrf.mxu0
  %v1204 = vadd.f32 %v60, %v1203
  %v1205 = vpop.f32.mrf.mxu0
  %v1206 = vpop.f32.mrf.mxu0
  %v1207 = vadd.f32 %v60, %v1206
  %v1208 = vpop.f32.mrf.mxu0
  %1209 = vmatprep.mubr.bf16.mxu0 0
  %1210 = vmatmul.mubr.bf16.gmra.mxu0 %v1044
  %v1211 = vpop.f32.mrf.mxu0
  %v1212 = vadd.f32 %v60, %v1211
  %v1213 = vpop.f32.mrf.mxu0
  %v1214 = vpop.f32.mrf.mxu0
  %v1215 = vadd.f32 %v60, %v1214
  %v1216 = vpop.f32.mrf.mxu0
  %1217 = vmatprep.mubr.bf16.mxu0 0
  %1218 = vmatmul.mubr.bf16.gmra.mxu0 %v1047
  %v1219 = vpop.f32.mrf.mxu0
  %v1220 = vadd.f32 %v60, %v1219
  %v1221 = vpop.f32.mrf.mxu0
  %v1222 = vpop.f32.mrf.mxu0
  %v1223 = vadd.f32 %v60, %v1222
  %v1224 = vpop.f32.mrf.mxu0
  %1225 = vdwg.mxu0
  %v1226 = vmul.f32 %v1084, %v1084
  %v1227 = vmul.f32 %v1087, %v1087
  %v1228 = vmul.f32 %v1092, %v1092
  %v1229 = vmul.f32 %v1095, %v1095
  %v1230 = vmul.f32 %v1100, %v1100
  %v1231 = vmul.f32 %v1103, %v1103
  %v1232 = vmul.f32 %v1108, %v1108
  %v1233 = vmul.f32 %v1111, %v1111
  %v1234 = vmul.f32 %v1116, %v1116
  %v1235 = vmul.f32 %v1119, %v1119
  %v1236 = vmul.f32 %v1124, %v1124
  %v1237 = vmul.f32 %v1127, %v1127
  %v1238 = vmul.f32 %v1132, %v1132
  %v1239 = vmul.f32 %v1135, %v1135
  %v1240 = vmul.f32 %v1140, %v1140
  %v1241 = vmul.f32 %v1143, %v1143
  %v1242 = vmul.f32 %v1148, %v1148
  %v1243 = vmul.f32 %v1151, %v1151
  %v1244 = vmul.f32 %v1156, %v1156
  %v1245 = vmul.f32 %v1159, %v1159
  %v1246 = vmul.f32 %v1164, %v1164
  %v1247 = vmul.f32 %v1167, %v1167
  %v1248 = vmul.f32 %v1172, %v1172
  %v1249 = vmul.f32 %v1175, %v1175
  %v1250 = vmul.f32 %v1180, %v1180
  %v1251 = vmul.f32 %v1183, %v1183
  %v1252 = vmul.f32 %v1188, %v1188
  %v1253 = vmul.f32 %v1191, %v1191
  %v1254 = vmul.f32 %v1196, %v1196
  %v1255 = vmul.f32 %v1199, %v1199
  %v1256 = vmul.f32 %v1204, %v1204
  %v1257 = vmul.f32 %v1207, %v1207
  %v1258 = vmul.f32 %v1212, %v1212
  %v1259 = vmul.f32 %v1215, %v1215
  %v1260 = vmul.f32 %v1220, %v1220
  %v1261 = vmul.f32 %v1223, %v1223
  %v1262 = vmax.f32 %v832, %v1226
  %v1263 = vmax.f32 %v833, %v1227
  %v1264 = vmax.f32 %v834, %v1228
  %v1265 = vmax.f32 %v835, %v1229
  %v1266 = vmax.f32 %v836, %v1230
  %v1267 = vmax.f32 %v837, %v1231
  %v1268 = vmax.f32 %v838, %v1232
  %v1269 = vmax.f32 %v839, %v1233
  %v1270 = vmax.f32 %v840, %v1234
  %v1271 = vmax.f32 %v841, %v1235
  %v1272 = vmax.f32 %v842, %v1236
  %v1273 = vmax.f32 %v843, %v1237
  %v1274 = vmax.f32 %v844, %v1238
  %v1275 = vmax.f32 %v845, %v1239
  %v1276 = vmax.f32 %v846, %v1240
  %v1277 = vmax.f32 %v847, %v1241
  %v1278 = vmax.f32 %v848, %v1242
  %v1279 = vmax.f32 %v849, %v1243
  %v1280 = vmax.f32 %v850, %v1244
  %v1281 = vmax.f32 %v851, %v1245
  %v1282 = vmax.f32 %v852, %v1246
  %v1283 = vmax.f32 %v853, %v1247
  %v1284 = vmax.f32 %v854, %v1248
  %v1285 = vmax.f32 %v855, %v1249
  %v1286 = vmax.f32 %v856, %v1250
  %v1287 = vmax.f32 %v857, %v1251
  %v1288 = vmax.f32 %v858, %v1252
  %v1289 = vmax.f32 %v859, %v1253
  %v1290 = vmax.f32 %v860, %v1254
  %v1291 = vmax.f32 %v861, %v1255
  %v1292 = vmax.f32 %v862, %v1256
  %v1293 = vmax.f32 %v863, %v1257
  %v1294 = vmax.f32 %v864, %v1258
  %v1295 = vmax.f32 %v865, %v1259
  %v1296 = vmax.f32 %v866, %v1260
  %v1297 = vmax.f32 %v867, %v1261
  %s1298 = scalar_lea.vmem %s0, 432
  %v1299 = vld [vmem:[%s1298] sm:$0xf]
  %v1300 = vld [vmem:[%s1298 + $0x4] sm:$0xf]
  %v1301 = vld [vmem:[%s1298 + $0x8] sm:$0xf]
  %v1302 = vld [vmem:[%s1298 + $0xc] sm:$0xf]
  %v1303 = vld [vmem:[%s1298 + $0x10] sm:$0xf]
  %v1304 = vld [vmem:[%s1298 + $0x14] sm:$0xf]
  %v1305 = vld [vmem:[%s1298 + $0x18] sm:$0xf]
  %v1306 = vld [vmem:[%s1298 + $0x1c] sm:$0xf]
  %v1307 = vld [vmem:[%s1298 + $0x20] sm:$0xf]
  %v1308 = vld [vmem:[%s1298 + $0x24] sm:$0xf]
  %v1309 = vld [vmem:[%s1298 + $0x28] sm:$0xf]
  %v1310 = vld [vmem:[%s1298 + $0x2c] sm:$0xf]
  %v1311 = vld [vmem:[%s1298 + $0x30] sm:$0xf]
  %v1312 = vld [vmem:[%s1298 + $0x34] sm:$0xf]
  %v1313 = vld [vmem:[%s1298 + $0x38] sm:$0xf]
  %v1314 = vld [vmem:[%s1298 + $0x3c] sm:$0xf]
  %v1315 = vld [vmem:[%s1298 + $0x40] sm:$0xf]
  %v1316 = vld [vmem:[%s1298 + $0x44] sm:$0xf]
  %v1317 = vld [vmem:[%s1298 + $0x48] sm:$0xf]
  %v1318 = vld [vmem:[%s1298 + $0x4c] sm:$0xf]
  %v1319 = vld [vmem:[%s1298 + $0x50] sm:$0xf]
  %v1320 = vld [vmem:[%s1298 + $0x54] sm:$0xf]
  %v1321 = vld [vmem:[%s1298 + $0x58] sm:$0xf]
  %v1322 = vld [vmem:[%s1298 + $0x5c] sm:$0xf]
  %v1323 = vld [vmem:[%s1298 + $0x60] sm:$0xf]
  %v1324 = vld [vmem:[%s1298 + $0x64] sm:$0xf]
  %v1325 = vld [vmem:[%s1298 + $0x68] sm:$0xf]
  %v1326 = vld [vmem:[%s1298 + $0x6c] sm:$0xf]
  %v1327 = vld [vmem:[%s1298 + $0x70] sm:$0xf]
  %v1328 = vld [vmem:[%s1298 + $0x74] sm:$0xf]
  %v1329 = vld [vmem:[%s1298 + $0x78] sm:$0xf]
  %v1330 = vld [vmem:[%s1298 + $0x7c] sm:$0xf]
  %v1331 = vld [vmem:[%s1298 + $0x80] sm:$0xf]
  %v1332 = vld [vmem:[%s1298 + $0x84] sm:$0xf]
  %v1333 = vld [vmem:[%s1298 + $0x88] sm:$0xf]
  %v1334 = vld [vmem:[%s1298 + $0x8c] sm:$0xf]
  %v1371 = vunpack.c.l.b16 %v1299
  %v1372 = vunpack.c.l.b16 %v1300
  %v1373 = vunpack.c.l.b16 %v1301
  %v1374 = vunpack.c.l.b16 %v1302
  %v1375 = vunpack.c.l.b16 %v1303
  %v1376 = vunpack.c.l.b16 %v1304
  %v1377 = vunpack.c.l.b16 %v1305
  %v1378 = vunpack.c.l.b16 %v1306
  %v1379 = vunpack.c.l.b16 %v1307
  %v1380 = vunpack.c.l.b16 %v1308
  %v1381 = vunpack.c.l.b16 %v1309
  %v1382 = vunpack.c.l.b16 %v1310
  %v1383 = vunpack.c.l.b16 %v1311
  %v1384 = vunpack.c.l.b16 %v1312
  %v1385 = vunpack.c.l.b16 %v1313
  %v1386 = vunpack.c.l.b16 %v1314
  %v1387 = vunpack.c.l.b16 %v1315
  %v1388 = vunpack.c.l.b16 %v1316
  %v1389 = vunpack.c.l.b16 %v1317
  %v1390 = vunpack.c.l.b16 %v1318
  %v1391 = vunpack.c.l.b16 %v1319
  %v1392 = vunpack.c.l.b16 %v1320
  %v1393 = vunpack.c.l.b16 %v1321
  %v1394 = vunpack.c.l.b16 %v1322
  %v1395 = vunpack.c.l.b16 %v1323
  %v1396 = vunpack.c.l.b16 %v1324
  %v1397 = vunpack.c.l.b16 %v1325
  %v1398 = vunpack.c.l.b16 %v1326
  %v1399 = vunpack.c.l.b16 %v1327
  %v1400 = vunpack.c.l.b16 %v1328
  %v1401 = vunpack.c.l.b16 %v1329
  %v1402 = vunpack.c.l.b16 %v1330
  %v1403 = vunpack.c.l.b16 %v1331
  %v1404 = vunpack.c.l.b16 %v1332
  %v1405 = vunpack.c.l.b16 %v1333
  %v1406 = vunpack.c.l.b16 %v1334
  %v1407 = vpack.c.b16 %v1372, %v1371
  %v1408 = vpack.c.b16 %v1374, %v1373
  %v1409 = vpack.c.b16 %v1376, %v1375
  %v1410 = vpack.c.b16 %v1378, %v1377
  %v1411 = vpack.c.b16 %v1380, %v1379
  %v1412 = vpack.c.b16 %v1382, %v1381
  %v1413 = vpack.c.b16 %v1384, %v1383
  %v1414 = vpack.c.b16 %v1386, %v1385
  %v1415 = vpack.c.b16 %v1388, %v1387
  %v1416 = vpack.c.b16 %v1390, %v1389
  %v1417 = vpack.c.b16 %v1392, %v1391
  %v1418 = vpack.c.b16 %v1394, %v1393
  %v1419 = vpack.c.b16 %v1396, %v1395
  %v1420 = vpack.c.b16 %v1398, %v1397
  %v1421 = vpack.c.b16 %v1400, %v1399
  %v1422 = vpack.c.b16 %v1402, %v1401
  %v1423 = vpack.c.b16 %v1404, %v1403
  %v1424 = vpack.c.b16 %v1406, %v1405
  %v1426 = vsel %vm163, %v1407, 0
  %v1429 = vsel %vm163, %v1408, 0
  %v1432 = vsel %vm163, %v1409, 0
  %v1435 = vsel %vm163, %v1410, 0
  %v1438 = vsel %vm163, %v1411, 0
  %v1441 = vsel %vm163, %v1412, 0
  %v1444 = vsel %vm163, %v1413, 0
  %v1447 = vsel %vm163, %v1414, 0
  %v1450 = vsel %vm163, %v1415, 0
  %v1453 = vsel %vm163, %v1416, 0
  %v1456 = vsel %vm163, %v1417, 0
  %v1459 = vsel %vm163, %v1418, 0
  %v1462 = vsel %vm163, %v1419, 0
  %v1465 = vsel %vm163, %v1420, 0
  %v1468 = vsel %vm163, %v1421, 0
  %v1471 = vsel %vm163, %v1422, 0
  %v1474 = vsel %vm163, %v1423, 0
  %v1477 = vsel %vm163, %v1424, 0
  %1479 = vmatprep.subr.bf16.mxu0 0
  %1480 = vmatpush1.bf16.msra.mxu0 0
  %1481 = vmatprep.subr.bf16.mxu0 0
  %1482 = vmatpush1.bf16.msra.mxu0 0
  %1483 = vmatprep.subr.bf16.mxu0 0
  %1484 = vmatpush1.bf16.msra.mxu0 0
  %1485 = vmatprep.subr.bf16.mxu0 0
  %1486 = vmatpush1.bf16.msra.mxu0 0
  %1487 = vmatprep.subr.bf16.mxu0 0
  %1488 = vmatpush1.bf16.msra.mxu0 0
  %1489 = vmatprep.subr.bf16.mxu0 0
  %1490 = vmatpush1.bf16.msra.mxu0 0
  %1491 = vmatprep.subr.bf16.mxu0 0
  %1492 = vmatpush1.bf16.msra.mxu0 %v223
  %1493 = vmatprep.subr.bf16.mxu0 0
  %1494 = vmatpush1.bf16.msra.mxu0 %v160
  %1495 = vmatprep.subr.bf16.mxu0 0
  %1496 = vmatpush2.bf16.msra.mxu0 0
  %1497 = vmatprep.subr.bf16.mxu0 0
  %1498 = vmatpush2.bf16.msra.mxu0 0
  %1499 = vmatprep.subr.bf16.mxu0 0
  %1500 = vmatpush2.bf16.msra.mxu0 0
  %1501 = vmatprep.subr.bf16.mxu0 0
  %1502 = vmatpush2.bf16.msra.mxu0 0
  %1503 = vmatprep.subr.bf16.mxu0 0
  %1504 = vmatpush2.bf16.msra.mxu0 0
  %1505 = vmatprep.subr.bf16.mxu0 0
  %1506 = vmatpush2.bf16.msra.mxu0 0
  %1507 = vmatprep.subr.bf16.mxu0 0
  %1508 = vmatpush2.bf16.msra.mxu0 0
  %1509 = vmatprep.subr.bf16.mxu0 0
  %1510 = vmatpush2.bf16.msra.mxu0 0
  %1511 = vmatprep.mubr.bf16.mxu0 0
  %1512 = vmatmul.mubr.bf16.gmra.mxu0 %v1426
  %v1513 = vpop.f32.mrf.mxu0
  %v1514 = vadd.f32 %v60, %v1513
  %v1515 = vpop.f32.mrf.mxu0
  %v1516 = vpop.f32.mrf.mxu0
  %v1517 = vadd.f32 %v60, %v1516
  %v1518 = vpop.f32.mrf.mxu0
  %1519 = vmatprep.mubr.bf16.mxu0 0
  %1520 = vmatmul.mubr.bf16.gmra.mxu0 %v1429
  %v1521 = vpop.f32.mrf.mxu0
  %v1522 = vadd.f32 %v60, %v1521
  %v1523 = vpop.f32.mrf.mxu0
  %v1524 = vpop.f32.mrf.mxu0
  %v1525 = vadd.f32 %v60, %v1524
  %v1526 = vpop.f32.mrf.mxu0
  %1527 = vmatprep.mubr.bf16.mxu0 0
  %1528 = vmatmul.mubr.bf16.gmra.mxu0 %v1432
  %v1529 = vpop.f32.mrf.mxu0
  %v1530 = vadd.f32 %v60, %v1529
  %v1531 = vpop.f32.mrf.mxu0
  %v1532 = vpop.f32.mrf.mxu0
  %v1533 = vadd.f32 %v60, %v1532
  %v1534 = vpop.f32.mrf.mxu0
  %1535 = vmatprep.mubr.bf16.mxu0 0
  %1536 = vmatmul.mubr.bf16.gmra.mxu0 %v1435
  %v1537 = vpop.f32.mrf.mxu0
  %v1538 = vadd.f32 %v60, %v1537
  %v1539 = vpop.f32.mrf.mxu0
  %v1540 = vpop.f32.mrf.mxu0
  %v1541 = vadd.f32 %v60, %v1540
  %v1542 = vpop.f32.mrf.mxu0
  %1543 = vmatprep.mubr.bf16.mxu0 0
  %1544 = vmatmul.mubr.bf16.gmra.mxu0 %v1438
  %v1545 = vpop.f32.mrf.mxu0
  %v1546 = vadd.f32 %v60, %v1545
  %v1547 = vpop.f32.mrf.mxu0
  %v1548 = vpop.f32.mrf.mxu0
  %v1549 = vadd.f32 %v60, %v1548
  %v1550 = vpop.f32.mrf.mxu0
  %1551 = vmatprep.mubr.bf16.mxu0 0
  %1552 = vmatmul.mubr.bf16.gmra.mxu0 %v1441
  %v1553 = vpop.f32.mrf.mxu0
  %v1554 = vadd.f32 %v60, %v1553
  %v1555 = vpop.f32.mrf.mxu0
  %v1556 = vpop.f32.mrf.mxu0
  %v1557 = vadd.f32 %v60, %v1556
  %v1558 = vpop.f32.mrf.mxu0
  %1559 = vmatprep.mubr.bf16.mxu0 0
  %1560 = vmatmul.mubr.bf16.gmra.mxu0 %v1444
  %v1561 = vpop.f32.mrf.mxu0
  %v1562 = vadd.f32 %v60, %v1561
  %v1563 = vpop.f32.mrf.mxu0
  %v1564 = vpop.f32.mrf.mxu0
  %v1565 = vadd.f32 %v60, %v1564
  %v1566 = vpop.f32.mrf.mxu0
  %1567 = vmatprep.mubr.bf16.mxu0 0
  %1568 = vmatmul.mubr.bf16.gmra.mxu0 %v1447
  %v1569 = vpop.f32.mrf.mxu0
  %v1570 = vadd.f32 %v60, %v1569
  %v1571 = vpop.f32.mrf.mxu0
  %v1572 = vpop.f32.mrf.mxu0
  %v1573 = vadd.f32 %v60, %v1572
  %v1574 = vpop.f32.mrf.mxu0
  %1575 = vmatprep.mubr.bf16.mxu0 0
  %1576 = vmatmul.mubr.bf16.gmra.mxu0 %v1450
  %v1577 = vpop.f32.mrf.mxu0
  %v1578 = vadd.f32 %v60, %v1577
  %v1579 = vpop.f32.mrf.mxu0
  %v1580 = vpop.f32.mrf.mxu0
  %v1581 = vadd.f32 %v60, %v1580
  %v1582 = vpop.f32.mrf.mxu0
  %1583 = vmatprep.mubr.bf16.mxu0 0
  %1584 = vmatmul.mubr.bf16.gmra.mxu0 %v1453
  %v1585 = vpop.f32.mrf.mxu0
  %v1586 = vadd.f32 %v60, %v1585
  %v1587 = vpop.f32.mrf.mxu0
  %v1588 = vpop.f32.mrf.mxu0
  %v1589 = vadd.f32 %v60, %v1588
  %v1590 = vpop.f32.mrf.mxu0
  %1591 = vmatprep.mubr.bf16.mxu0 0
  %1592 = vmatmul.mubr.bf16.gmra.mxu0 %v1456
  %v1593 = vpop.f32.mrf.mxu0
  %v1594 = vadd.f32 %v60, %v1593
  %v1595 = vpop.f32.mrf.mxu0
  %v1596 = vpop.f32.mrf.mxu0
  %v1597 = vadd.f32 %v60, %v1596
  %v1598 = vpop.f32.mrf.mxu0
  %1599 = vmatprep.mubr.bf16.mxu0 0
  %1600 = vmatmul.mubr.bf16.gmra.mxu0 %v1459
  %v1601 = vpop.f32.mrf.mxu0
  %v1602 = vadd.f32 %v60, %v1601
  %v1603 = vpop.f32.mrf.mxu0
  %v1604 = vpop.f32.mrf.mxu0
  %v1605 = vadd.f32 %v60, %v1604
  %v1606 = vpop.f32.mrf.mxu0
  %1607 = vmatprep.mubr.bf16.mxu0 0
  %1608 = vmatmul.mubr.bf16.gmra.mxu0 %v1462
  %v1609 = vpop.f32.mrf.mxu0
  %v1610 = vadd.f32 %v60, %v1609
  %v1611 = vpop.f32.mrf.mxu0
  %v1612 = vpop.f32.mrf.mxu0
  %v1613 = vadd.f32 %v60, %v1612
  %v1614 = vpop.f32.mrf.mxu0
  %1615 = vmatprep.mubr.bf16.mxu0 0
  %1616 = vmatmul.mubr.bf16.gmra.mxu0 %v1465
  %v1617 = vpop.f32.mrf.mxu0
  %v1618 = vadd.f32 %v60, %v1617
  %v1619 = vpop.f32.mrf.mxu0
  %v1620 = vpop.f32.mrf.mxu0
  %v1621 = vadd.f32 %v60, %v1620
  %v1622 = vpop.f32.mrf.mxu0
  %1623 = vmatprep.mubr.bf16.mxu0 0
  %1624 = vmatmul.mubr.bf16.gmra.mxu0 %v1468
  %v1625 = vpop.f32.mrf.mxu0
  %v1626 = vadd.f32 %v60, %v1625
  %v1627 = vpop.f32.mrf.mxu0
  %v1628 = vpop.f32.mrf.mxu0
  %v1629 = vadd.f32 %v60, %v1628
  %v1630 = vpop.f32.mrf.mxu0
  %1631 = vmatprep.mubr.bf16.mxu0 0
  %1632 = vmatmul.mubr.bf16.gmra.mxu0 %v1471
  %v1633 = vpop.f32.mrf.mxu0
  %v1634 = vadd.f32 %v60, %v1633
  %v1635 = vpop.f32.mrf.mxu0
  %v1636 = vpop.f32.mrf.mxu0
  %v1637 = vadd.f32 %v60, %v1636
  %v1638 = vpop.f32.mrf.mxu0
  %1639 = vmatprep.mubr.bf16.mxu0 0
  %1640 = vmatmul.mubr.bf16.gmra.mxu0 %v1474
  %v1641 = vpop.f32.mrf.mxu0
  %v1642 = vadd.f32 %v60, %v1641
  %v1643 = vpop.f32.mrf.mxu0
  %v1644 = vpop.f32.mrf.mxu0
  %v1645 = vadd.f32 %v60, %v1644
  %v1646 = vpop.f32.mrf.mxu0
  %1647 = vmatprep.mubr.bf16.mxu0 0
  %1648 = vmatmul.mubr.bf16.gmra.mxu0 %v1477
  %v1649 = vpop.f32.mrf.mxu0
  %v1650 = vadd.f32 %v60, %v1649
  %v1651 = vpop.f32.mrf.mxu0
  %v1652 = vpop.f32.mrf.mxu0
  %v1653 = vadd.f32 %v60, %v1652
  %v1654 = vpop.f32.mrf.mxu0
  %1655 = vdwg.mxu0
  %v1656 = vmul.f32 %v1514, %v1514
  %v1657 = vmul.f32 %v1517, %v1517
  %v1658 = vmul.f32 %v1522, %v1522
  %v1659 = vmul.f32 %v1525, %v1525
  %v1660 = vmul.f32 %v1530, %v1530
  %v1661 = vmul.f32 %v1533, %v1533
  %v1662 = vmul.f32 %v1538, %v1538
  %v1663 = vmul.f32 %v1541, %v1541
  %v1664 = vmul.f32 %v1546, %v1546
  %v1665 = vmul.f32 %v1549, %v1549
  %v1666 = vmul.f32 %v1554, %v1554
  %v1667 = vmul.f32 %v1557, %v1557
  %v1668 = vmul.f32 %v1562, %v1562
  %v1669 = vmul.f32 %v1565, %v1565
  %v1670 = vmul.f32 %v1570, %v1570
  %v1671 = vmul.f32 %v1573, %v1573
  %v1672 = vmul.f32 %v1578, %v1578
  %v1673 = vmul.f32 %v1581, %v1581
  %v1674 = vmul.f32 %v1586, %v1586
  %v1675 = vmul.f32 %v1589, %v1589
  %v1676 = vmul.f32 %v1594, %v1594
  %v1677 = vmul.f32 %v1597, %v1597
  %v1678 = vmul.f32 %v1602, %v1602
  %v1679 = vmul.f32 %v1605, %v1605
  %v1680 = vmul.f32 %v1610, %v1610
  %v1681 = vmul.f32 %v1613, %v1613
  %v1682 = vmul.f32 %v1618, %v1618
  %v1683 = vmul.f32 %v1621, %v1621
  %v1684 = vmul.f32 %v1626, %v1626
  %v1685 = vmul.f32 %v1629, %v1629
  %v1686 = vmul.f32 %v1634, %v1634
  %v1687 = vmul.f32 %v1637, %v1637
  %v1688 = vmul.f32 %v1642, %v1642
  %v1689 = vmul.f32 %v1645, %v1645
  %v1690 = vmul.f32 %v1650, %v1650
  %v1691 = vmul.f32 %v1653, %v1653
  %v1692 = vmax.f32 %v1262, %v1656
  %v1693 = vmax.f32 %v1263, %v1657
  %v1694 = vmax.f32 %v1264, %v1658
  %v1695 = vmax.f32 %v1265, %v1659
  %v1696 = vmax.f32 %v1266, %v1660
  %v1697 = vmax.f32 %v1267, %v1661
  %v1698 = vmax.f32 %v1268, %v1662
  %v1699 = vmax.f32 %v1269, %v1663
  %v1700 = vmax.f32 %v1270, %v1664
  %v1701 = vmax.f32 %v1271, %v1665
  %v1702 = vmax.f32 %v1272, %v1666
  %v1703 = vmax.f32 %v1273, %v1667
  %v1704 = vmax.f32 %v1274, %v1668
  %v1705 = vmax.f32 %v1275, %v1669
  %v1706 = vmax.f32 %v1276, %v1670
  %v1707 = vmax.f32 %v1277, %v1671
  %v1708 = vmax.f32 %v1278, %v1672
  %v1709 = vmax.f32 %v1279, %v1673
  %v1710 = vmax.f32 %v1280, %v1674
  %v1711 = vmax.f32 %v1281, %v1675
  %v1712 = vmax.f32 %v1282, %v1676
  %v1713 = vmax.f32 %v1283, %v1677
  %v1714 = vmax.f32 %v1284, %v1678
  %v1715 = vmax.f32 %v1285, %v1679
  %v1716 = vmax.f32 %v1286, %v1680
  %v1717 = vmax.f32 %v1287, %v1681
  %v1718 = vmax.f32 %v1288, %v1682
  %v1719 = vmax.f32 %v1289, %v1683
  %v1720 = vmax.f32 %v1290, %v1684
  %v1721 = vmax.f32 %v1291, %v1685
  %v1722 = vmax.f32 %v1292, %v1686
  %v1723 = vmax.f32 %v1293, %v1687
  %v1724 = vmax.f32 %v1294, %v1688
  %v1725 = vmax.f32 %v1295, %v1689
  %v1726 = vmax.f32 %v1296, %v1690
  %v1727 = vmax.f32 %v1297, %v1691
  %1728 = vst [vmem:[%s3] sm:$0xff] %v1692
  %1729 = vst [vmem:[%s3 + $0x8] sm:$0xff] %v1693
  %1730 = vst [vmem:[%s3 + $0x10] sm:$0xff] %v1694
  %1731 = vst [vmem:[%s3 + $0x18] sm:$0xff] %v1695
  %1732 = vst [vmem:[%s3 + $0x20] sm:$0xff] %v1696
  %1733 = vst [vmem:[%s3 + $0x28] sm:$0xff] %v1697
  %1734 = vst [vmem:[%s3 + $0x30] sm:$0xff] %v1698
  %1735 = vst [vmem:[%s3 + $0x38] sm:$0xff] %v1699
  %1736 = vst [vmem:[%s3 + $0x40] sm:$0xff] %v1700
  %1737 = vst [vmem:[%s3 + $0x48] sm:$0xff] %v1701
  %1738 = vst [vmem:[%s3 + $0x50] sm:$0xff] %v1702
  %1739 = vst [vmem:[%s3 + $0x58] sm:$0xff] %v1703
  %1740 = vst [vmem:[%s3 + $0x60] sm:$0xff] %v1704
  %1741 = vst [vmem:[%s3 + $0x68] sm:$0xff] %v1705
  %1742 = vst [vmem:[%s3 + $0x70] sm:$0xff] %v1706
  %1743 = vst [vmem:[%s3 + $0x78] sm:$0xff] %v1707
  %1744 = vst [vmem:[%s3 + $0x80] sm:$0xff] %v1708
  %1745 = vst [vmem:[%s3 + $0x88] sm:$0xff] %v1709
  %1746 = vst [vmem:[%s3 + $0x90] sm:$0xff] %v1710
  %1747 = vst [vmem:[%s3 + $0x98] sm:$0xff] %v1711
  %1748 = vst [vmem:[%s3 + $0xa0] sm:$0xff] %v1712
  %1749 = vst [vmem:[%s3 + $0xa8] sm:$0xff] %v1713
  %1750 = vst [vmem:[%s3 + $0xb0] sm:$0xff] %v1714
  %1751 = vst [vmem:[%s3 + $0xb8] sm:$0xff] %v1715
  %1752 = vst [vmem:[%s3 + $0xc0] sm:$0xff] %v1716
  %1753 = vst [vmem:[%s3 + $0xc8] sm:$0xff] %v1717
  %1754 = vst [vmem:[%s3 + $0xd0] sm:$0xff] %v1718
  %1755 = vst [vmem:[%s3 + $0xd8] sm:$0xff] %v1719
  %1756 = vst [vmem:[%s3 + $0xe0] sm:$0xff] %v1720
  %1757 = vst [vmem:[%s3 + $0xe8] sm:$0xff] %v1721
  %1758 = vst [vmem:[%s3 + $0xf0] sm:$0xff] %v1722
  %1759 = vst [vmem:[%s3 + $0xf8] sm:$0xff] %v1723
  %1760 = vst [vmem:[%s3 + $0x100] sm:$0xff] %v1724
  %1761 = vst [vmem:[%s3 + $0x108] sm:$0xff] %v1725
  %1762 = vst [vmem:[%s3 + $0x110] sm:$0xff] %v1726
  %1763 = vst [vmem:[%s3 + $0x118] sm:$0xff] %v1727
  // Predicated region
  $region14: #{square_lenet_forward.3} parent=0 // pred_check
    _
  $region15: #{square_lenet_forward.3} parent=0 // pred_check_branch
    %1765 = sbr.rel (0) target = $region17
  $region16: #{square_lenet_forward.3} parent=0 // pred_region
    _
  $region17: #{square_lenet_forward.3} parent=0 // pred_fallthru
    _
  // Predicated region
  $region18: #{square_lenet_forward.3} parent=0 // pred_check
    _
  $region19: #{square_lenet_forward.3} parent=0 // pred_check_branch
    %1767 = sbr.rel (0) target = $region21
  $region20: #{square_lenet_forward.3} parent=0 // pred_region
    _
  $region21: #{square_lenet_forward.3} parent=0 // pred_fallthru
    _

// kernel: square_lenet_forward.4
$region0: #{square_lenet_forward.4}
  #allocation0 [shape = 'u32[]', space=smem, size = 0x4, offset = 0x4, fixed_abs, tag = 'smem constant byte address 0x4 - core index']
  #allocation1 [shape = 'u32[144,128]{1,0:T(1,128)}', space=vmem, size = 0x12000, scoped, tag = 'internal scratch']
  %s0 = inlined_call_operand.vmem [shape: bf16[4,32,150], index: 0, kind: input, shape index: {}]
  %s1 = inlined_call_operand.vmem [shape: bf16[150,128], index: 1, kind: input, shape index: {}]
  %s2 = inlined_call_operand.vmem [shape: f32[1,128], index: 2, kind: input, shape index: {}]
  %s3 = inlined_call_operand.vmem [shape: f32[32,128], index: 3, kind: output, shape index: {}]
  %s4 = sld [smem:[#allocation0]]
  $region22: #{square_lenet_forward.4} parent=0
    _
  %s6 = ssub.s32 1, %s4
  %s7 = scalar_select 0, %s6, %s4
  // Predicated region
  $region2: #{square_lenet_forward.4} parent=0 // pred_check
    _
  $region3: #{square_lenet_forward.4} parent=0 // pred_check_branch
    %9 = sbr.rel (0) target = $region5
  $region4: #{square_lenet_forward.4} parent=0 // pred_region
    _
  $region5: #{square_lenet_forward.4} parent=0 // pred_fallthru
    _
  // Predicated region
  $region6: #{square_lenet_forward.4} parent=0 // pred_check
    _
  $region7: #{square_lenet_forward.4} parent=0 // pred_check_branch
    %11 = sbr.rel (0) target = $region9
  $region8: #{square_lenet_forward.4} parent=0 // pred_region
    _
  $region9: #{square_lenet_forward.4} parent=0 // pred_fallthru
    _
  // Predicated region
  $region10: #{square_lenet_forward.4} parent=0 // pred_check
    _
  $region11: #{square_lenet_forward.4} parent=0 // pred_check_branch
    %13 = sbr.rel (0) target = $region13
  $region12: #{square_lenet_forward.4} parent=0 // pred_region
    _
  $region13: #{square_lenet_forward.4} parent=0 // pred_fallthru
    _
  %v15 = vld [vmem:[%s1] sm:$0xf]
  %v16 = vld [vmem:[%s1 + $0x4] sm:$0xf]
  %v17 = vld [vmem:[%s1 + $0x8] sm:$0xf]
  %v18 = vld [vmem:[%s1 + $0xc] sm:$0xf]
  %v19 = vld [vmem:[%s1 + $0x10] sm:$0xf]
  %v20 = vld [vmem:[%s1 + $0x14] sm:$0xf]
  %v21 = vld [vmem:[%s1 + $0x18] sm:$0xf]
  %v22 = vld [vmem:[%s1 + $0x1c] sm:$0xf]
  %v23 = vld [vmem:[%s1 + $0x20] sm:$0xf]
  %v24 = vld [vmem:[%s1 + $0x24] sm:$0xf]
  %v25 = vld [vmem:[%s1 + $0x28] sm:$0xf]
  %v26 = vld [vmem:[%s1 + $0x2c] sm:$0xf]
  %v27 = vld [vmem:[%s1 + $0x30] sm:$0xf]
  %v28 = vld [vmem:[%s1 + $0x34] sm:$0xf]
  %v29 = vld [vmem:[%s1 + $0x38] sm:$0xf]
  %v30 = vld [vmem:[%s1 + $0x3c] sm:$0xf]
  %v31 = vld [vmem:[%s1 + $0x40] sm:$0xf]
  %v32 = vld [vmem:[%s1 + $0x44] sm:$0xf]
  %v33 = vld [vmem:[%s1 + $0x48] sm:$0x7]
  %v34 = vld [vmem:[%s2] sm:$0x1]
  %v35 = vld [vmem:[%s0] sm:$0xff]
  %v36 = vld [vmem:[%s0 + $0x8] sm:$0xff]
  %v37 = vld [vmem:[%s0 + $0x10] sm:$0xff]
  %v38 = vld [vmem:[%s0 + $0x18] sm:$0xff]
  %v40 = vlaneseq
  %v41 = vshrl.u32 %v40, 7
  %v42 = vsub.s32 0, %v41
  %v43 = vrot.slane %v34, %v42
  %v49 = vunpack.c.l.b16 %v35
  %v50 = vunpack.c.h.b16 %v35
  %v51 = vunpack.c.l.b16 %v36
  %v52 = vunpack.c.h.b16 %v36
  %v53 = vunpack.c.l.b16 %v37
  %v54 = vunpack.c.h.b16 %v37
  %v55 = vunpack.c.l.b16 %v38
  %v56 = vunpack.c.h.b16 %v38
  %v57 = vpack.c.b16 %v51, %v49
  %v58 = vpack.c.b16 %v52, %v50
  %v59 = vpack.c.b16 %v55, %v53
  %v60 = vpack.c.b16 %v56, %v54
  %v82 = vunpack.c.l.b16 %v15
  %v83 = vunpack.c.l.b16 %v16
  %v84 = vunpack.c.l.b16 %v17
  %v85 = vunpack.c.l.b16 %v18
  %v86 = vunpack.c.l.b16 %v19
  %v87 = vunpack.c.l.b16 %v20
  %v88 = vunpack.c.l.b16 %v21
  %v89 = vunpack.c.l.b16 %v22
  %v90 = vunpack.c.l.b16 %v23
  %v91 = vunpack.c.l.b16 %v24
  %v92 = vunpack.c.l.b16 %v25
  %v93 = vunpack.c.l.b16 %v26
  %v94 = vunpack.c.l.b16 %v27
  %v95 = vunpack.c.l.b16 %v28
  %v96 = vunpack.c.l.b16 %v29
  %v97 = vunpack.c.l.b16 %v30
  %v98 = vunpack.c.l.b16 %v31
  %v99 = vunpack.c.l.b16 %v32
  %v100 = vunpack.c.l.b16 %v33
  %v101 = vpack.c.b16 %v83, %v82
  %v102 = vpack.c.b16 %v85, %v84
  %v103 = vpack.c.b16 %v87, %v86
  %v104 = vpack.c.b16 %v89, %v88
  %v105 = vpack.c.b16 %v91, %v90
  %v106 = vpack.c.b16 %v93, %v92
  %v107 = vpack.c.b16 %v95, %v94
  %v108 = vpack.c.b16 %v97, %v96
  %v109 = vpack.c.b16 %v99, %v98
  %v110 = vpack.c.b16 %v100, %v100
  %vm120 = vcmask 179200
  %v122 = vsel %vm120, %v58, 0
  %v125 = vsel %vm120, %v60, 0
  %vm127 = vcmask 1042432
  %v129 = vsel %vm127, %v110, 0
  %131 = vmatprep.subr.bf16.mxu0 0
  %132 = vmatpush1.bf16.msra.mxu0 %v108
  %133 = vmatprep.subr.bf16.mxu0 0
  %134 = vmatpush1.bf16.msra.mxu0 %v107
  %135 = vmatprep.subr.bf16.mxu0 0
  %136 = vmatpush1.bf16.msra.mxu0 %v106
  %137 = vmatprep.subr.bf16.mxu0 0
  %138 = vmatpush1.bf16.msra.mxu0 %v105
  %139 = vmatprep.subr.bf16.mxu0 0
  %140 = vmatpush1.bf16.msra.mxu0 %v104
  %141 = vmatprep.subr.bf16.mxu0 0
  %142 = vmatpush1.bf16.msra.mxu0 %v103
  %143 = vmatprep.subr.bf16.mxu0 0
  %144 = vmatpush1.bf16.msra.mxu0 %v102
  %145 = vmatprep.subr.bf16.mxu0 0
  %146 = vmatpush1.bf16.msra.mxu0 %v101
  %147 = vmatprep.subr.bf16.mxu0 0
  %148 = vmatpush2.bf16.msra.mxu0 0
  %149 = vmatprep.subr.bf16.mxu0 0
  %150 = vmatpush2.bf16.msra.mxu0 0
  %151 = vmatprep.subr.bf16.mxu0 0
  %152 = vmatpush2.bf16.msra.mxu0 0
  %153 = vmatprep.subr.bf16.mxu0 0
  %154 = vmatpush2.bf16.msra.mxu0 0
  %155 = vmatprep.subr.bf16.mxu0 0
  %156 = vmatpush2.bf16.msra.mxu0 0
  %157 = vmatprep.subr.bf16.mxu0 0
  %158 = vmatpush2.bf16.msra.mxu0 0
  %159 = vmatprep.subr.bf16.mxu0 0
  %160 = vmatpush2.bf16.msra.mxu0 %v129
  %161 = vmatprep.subr.bf16.mxu0 0
  %162 = vmatpush2.bf16.msra.mxu0 %v109
  %163 = vmatprep.mubr.bf16.mxu0 %v122
  %164 = vmatmul.mubr.bf16.gmra.mxu0 %v57
  %v165 = vpop.f32.mrf.mxu0
  %v166 = vadd.f32 %v43, %v165
  %v167 = vpop.f32.mrf.mxu0
  %v168 = vpop.f32.mrf.mxu0
  %v169 = vadd.f32 %v43, %v168
  %v170 = vpop.f32.mrf.mxu0
  %171 = vmatprep.mubr.bf16.mxu0 %v125
  %172 = vmatmul.mubr.bf16.gmra.mxu0 %v59
  %v173 = vpop.f32.mrf.mxu0
  %v174 = vadd.f32 %v43, %v173
  %v175 = vpop.f32.mrf.mxu0
  %v176 = vpop.f32.mrf.mxu0
  %v177 = vadd.f32 %v43, %v176
  %v178 = vpop.f32.mrf.mxu0
  %179 = vdwg.mxu0
  %v180 = vmul.f32 %v166, %v166
  %v181 = vmul.f32 %v169, %v169
  %v182 = vmul.f32 %v174, %v174
  %v183 = vmul.f32 %v177, %v177
  %s184 = scalar_lea.vmem %s0, 32
  %v185 = vld [vmem:[%s184] sm:$0xff]
  %v186 = vld [vmem:[%s184 + $0x8] sm:$0xff]
  %v187 = vld [vmem:[%s184 + $0x10] sm:$0xff]
  %v188 = vld [vmem:[%s184 + $0x18] sm:$0xff]
  %v193 = vunpack.c.l.b16 %v185
  %v194 = vunpack.c.h.b16 %v185
  %v195 = vunpack.c.l.b16 %v186
  %v196 = vunpack.c.h.b16 %v186
  %v197 = vunpack.c.l.b16 %v187
  %v198 = vunpack.c.h.b16 %v187
  %v199 = vunpack.c.l.b16 %v188
  %v200 = vunpack.c.h.b16 %v188
  %v201 = vpack.c.b16 %v195, %v193
  %v202 = vpack.c.b16 %v196, %v194
  %v203 = vpack.c.b16 %v199, %v197
  %v204 = vpack.c.b16 %v200, %v198
  %v208 = vsel %vm120, %v202, 0
  %v211 = vsel %vm120, %v204, 0
  %213 = vmatprep.subr.bf16.mxu0 0
  %214 = vmatpush1.bf16.msra.mxu0 %v108
  %215 = vmatprep.subr.bf16.mxu0 0
  %216 = vmatpush1.bf16.msra.mxu0 %v107
  %217 = vmatprep.subr.bf16.mxu0 0
  %218 = vmatpush1.bf16.msra.mxu0 %v106
  %219 = vmatprep.subr.bf16.mxu0 0
  %220 = vmatpush1.bf16.msra.mxu0 %v105
  %221 = vmatprep.subr.bf16.mxu0 0
  %222 = vmatpush1.bf16.msra.mxu0 %v104
  %223 = vmatprep.subr.bf16.mxu0 0
  %224 = vmatpush1.bf16.msra.mxu0 %v103
  %225 = vmatprep.subr.bf16.mxu0 0
  %226 = vmatpush1.bf16.msra.mxu0 %v102
  %227 = vmatprep.subr.bf16.mxu0 0
  %228 = vmatpush1.bf16.msra.mxu0 %v101
  %229 = vmatprep.subr.bf16.mxu0 0
  %230 = vmatpush2.bf16.msra.mxu0 0
  %231 = vmatprep.subr.bf16.mxu0 0
  %232 = vmatpush2.bf16.msra.mxu0 0
  %233 = vmatprep.subr.bf16.mxu0 0
  %234 = vmatpush2.bf16.msra.mxu0 0
  %235 = vmatprep.subr.bf16.mxu0 0
  %236 = vmatpush2.bf16.msra.mxu0 0
  %237 = vmatprep.subr.bf16.mxu0 0
  %238 = vmatpush2.bf16.msra.mxu0 0
  %239 = vmatprep.subr.bf16.mxu0 0
  %240 = vmatpush2.bf16.msra.mxu0 0
  %241 = vmatprep.subr.bf16.mxu0 0
  %242 = vmatpush2.bf16.msra.mxu0 %v129
  %243 = vmatprep.subr.bf16.mxu0 0
  %244 = vmatpush2.bf16.msra.mxu0 %v109
  %245 = vmatprep.mubr.bf16.mxu0 %v208
  %246 = vmatmul.mubr.bf16.gmra.mxu0 %v201
  %v247 = vpop.f32.mrf.mxu0
  %v248 = vadd.f32 %v43, %v247
  %v249 = vpop.f32.mrf.mxu0
  %v250 = vpop.f32.mrf.mxu0
  %v251 = vadd.f32 %v43, %v250
  %v252 = vpop.f32.mrf.mxu0
  %253 = vmatprep.mubr.bf16.mxu0 %v211
  %254 = vmatmul.mubr.bf16.gmra.mxu0 %v203
  %v255 = vpop.f32.mrf.mxu0
  %v256 = vadd.f32 %v43, %v255
  %v257 = vpop.f32.mrf.mxu0
  %v258 = vpop.f32.mrf.mxu0
  %v259 = vadd.f32 %v43, %v258
  %v260 = vpop.f32.mrf.mxu0
  %261 = vdwg.mxu0
  %v262 = vmul.f32 %v248, %v248
  %v263 = vmul.f32 %v251, %v251
  %v264 = vmul.f32 %v256, %v256
  %v265 = vmul.f32 %v259, %v259
  %v266 = vmax.f32 %v180, %v262
  %v267 = vmax.f32 %v181, %v263
  %v268 = vmax.f32 %v182, %v264
  %v269 = vmax.f32 %v183, %v265
  %s270 = scalar_lea.vmem %s0, 64
  %v271 = vld [vmem:[%s270] sm:$0xff]
  %v272 = vld [vmem:[%s270 + $0x8] sm:$0xff]
  %v273 = vld [vmem:[%s270 + $0x10] sm:$0xff]
  %v274 = vld [vmem:[%s270 + $0x18] sm:$0xff]
  %v279 = vunpack.c.l.b16 %v271
  %v280 = vunpack.c.h.b16 %v271
  %v281 = vunpack.c.l.b16 %v272
  %v282 = vunpack.c.h.b16 %v272
  %v283 = vunpack.c.l.b16 %v273
  %v284 = vunpack.c.h.b16 %v273
  %v285 = vunpack.c.l.b16 %v274
  %v286 = vunpack.c.h.b16 %v274
  %v287 = vpack.c.b16 %v281, %v279
  %v288 = vpack.c.b16 %v282, %v280
  %v289 = vpack.c.b16 %v285, %v283
  %v290 = vpack.c.b16 %v286, %v284
  %v294 = vsel %vm120, %v288, 0
  %v297 = vsel %vm120, %v290, 0
  %299 = vmatprep.subr.bf16.mxu0 0
  %300 = vmatpush1.bf16.msra.mxu0 %v108
  %301 = vmatprep.subr.bf16.mxu0 0
  %302 = vmatpush1.bf16.msra.mxu0 %v107
  %303 = vmatprep.subr.bf16.mxu0 0
  %304 = vmatpush1.bf16.msra.mxu0 %v106
  %305 = vmatprep.subr.bf16.mxu0 0
  %306 = vmatpush1.bf16.msra.mxu0 %v105
  %307 = vmatprep.subr.bf16.mxu0 0
  %308 = vmatpush1.bf16.msra.mxu0 %v104
  %309 = vmatprep.subr.bf16.mxu0 0
  %310 = vmatpush1.bf16.msra.mxu0 %v103
  %311 = vmatprep.subr.bf16.mxu0 0
  %312 = vmatpush1.bf16.msra.mxu0 %v102
  %313 = vmatprep.subr.bf16.mxu0 0
  %314 = vmatpush1.bf16.msra.mxu0 %v101
  %315 = vmatprep.subr.bf16.mxu0 0
  %316 = vmatpush2.bf16.msra.mxu0 0
  %317 = vmatprep.subr.bf16.mxu0 0
  %318 = vmatpush2.bf16.msra.mxu0 0
  %319 = vmatprep.subr.bf16.mxu0 0
  %320 = vmatpush2.bf16.msra.mxu0 0
  %321 = vmatprep.subr.bf16.mxu0 0
  %322 = vmatpush2.bf16.msra.mxu0 0
  %323 = vmatprep.subr.bf16.mxu0 0
  %324 = vmatpush2.bf16.msra.mxu0 0
  %325 = vmatprep.subr.bf16.mxu0 0
  %326 = vmatpush2.bf16.msra.mxu0 0
  %327 = vmatprep.subr.bf16.mxu0 0
  %328 = vmatpush2.bf16.msra.mxu0 %v129
  %329 = vmatprep.subr.bf16.mxu0 0
  %330 = vmatpush2.bf16.msra.mxu0 %v109
  %331 = vmatprep.mubr.bf16.mxu0 %v294
  %332 = vmatmul.mubr.bf16.gmra.mxu0 %v287
  %v333 = vpop.f32.mrf.mxu0
  %v334 = vadd.f32 %v43, %v333
  %v335 = vpop.f32.mrf.mxu0
  %v336 = vpop.f32.mrf.mxu0
  %v337 = vadd.f32 %v43, %v336
  %v338 = vpop.f32.mrf.mxu0
  %339 = vmatprep.mubr.bf16.mxu0 %v297
  %340 = vmatmul.mubr.bf16.gmra.mxu0 %v289
  %v341 = vpop.f32.mrf.mxu0
  %v342 = vadd.f32 %v43, %v341
  %v343 = vpop.f32.mrf.mxu0
  %v344 = vpop.f32.mrf.mxu0
  %v345 = vadd.f32 %v43, %v344
  %v346 = vpop.f32.mrf.mxu0
  %347 = vdwg.mxu0
  %v348 = vmul.f32 %v334, %v334
  %v349 = vmul.f32 %v337, %v337
  %v350 = vmul.f32 %v342, %v342
  %v351 = vmul.f32 %v345, %v345
  %v352 = vmax.f32 %v266, %v348
  %v353 = vmax.f32 %v267, %v349
  %v354 = vmax.f32 %v268, %v350
  %v355 = vmax.f32 %v269, %v351
  %s356 = scalar_lea.vmem %s0, 96
  %v357 = vld [vmem:[%s356] sm:$0xff]
  %v358 = vld [vmem:[%s356 + $0x8] sm:$0xff]
  %v359 = vld [vmem:[%s356 + $0x10] sm:$0xff]
  %v360 = vld [vmem:[%s356 + $0x18] sm:$0xff]
  %v365 = vunpack.c.l.b16 %v357
  %v366 = vunpack.c.h.b16 %v357
  %v367 = vunpack.c.l.b16 %v358
  %v368 = vunpack.c.h.b16 %v358
  %v369 = vunpack.c.l.b16 %v359
  %v370 = vunpack.c.h.b16 %v359
  %v371 = vunpack.c.l.b16 %v360
  %v372 = vunpack.c.h.b16 %v360
  %v373 = vpack.c.b16 %v367, %v365
  %v374 = vpack.c.b16 %v368, %v366
  %v375 = vpack.c.b16 %v371, %v369
  %v376 = vpack.c.b16 %v372, %v370
  %v380 = vsel %vm120, %v374, 0
  %v383 = vsel %vm120, %v376, 0
  %385 = vmatprep.subr.bf16.mxu0 0
  %386 = vmatpush1.bf16.msra.mxu0 %v108
  %387 = vmatprep.subr.bf16.mxu0 0
  %388 = vmatpush1.bf16.msra.mxu0 %v107
  %389 = vmatprep.subr.bf16.mxu0 0
  %390 = vmatpush1.bf16.msra.mxu0 %v106
  %391 = vmatprep.subr.bf16.mxu0 0
  %392 = vmatpush1.bf16.msra.mxu0 %v105
  %393 = vmatprep.subr.bf16.mxu0 0
  %394 = vmatpush1.bf16.msra.mxu0 %v104
  %395 = vmatprep.subr.bf16.mxu0 0
  %396 = vmatpush1.bf16.msra.mxu0 %v103
  %397 = vmatprep.subr.bf16.mxu0 0
  %398 = vmatpush1.bf16.msra.mxu0 %v102
  %399 = vmatprep.subr.bf16.mxu0 0
  %400 = vmatpush1.bf16.msra.mxu0 %v101
  %401 = vmatprep.subr.bf16.mxu0 0
  %402 = vmatpush2.bf16.msra.mxu0 0
  %403 = vmatprep.subr.bf16.mxu0 0
  %404 = vmatpush2.bf16.msra.mxu0 0
  %405 = vmatprep.subr.bf16.mxu0 0
  %406 = vmatpush2.bf16.msra.mxu0 0
  %407 = vmatprep.subr.bf16.mxu0 0
  %408 = vmatpush2.bf16.msra.mxu0 0
  %409 = vmatprep.subr.bf16.mxu0 0
  %410 = vmatpush2.bf16.msra.mxu0 0
  %411 = vmatprep.subr.bf16.mxu0 0
  %412 = vmatpush2.bf16.msra.mxu0 0
  %413 = vmatprep.subr.bf16.mxu0 0
  %414 = vmatpush2.bf16.msra.mxu0 %v129
  %415 = vmatprep.subr.bf16.mxu0 0
  %416 = vmatpush2.bf16.msra.mxu0 %v109
  %417 = vmatprep.mubr.bf16.mxu0 %v380
  %418 = vmatmul.mubr.bf16.gmra.mxu0 %v373
  %v419 = vpop.f32.mrf.mxu0
  %v420 = vadd.f32 %v43, %v419
  %v421 = vpop.f32.mrf.mxu0
  %v422 = vpop.f32.mrf.mxu0
  %v423 = vadd.f32 %v43, %v422
  %v424 = vpop.f32.mrf.mxu0
  %425 = vmatprep.mubr.bf16.mxu0 %v383
  %426 = vmatmul.mubr.bf16.gmra.mxu0 %v375
  %v427 = vpop.f32.mrf.mxu0
  %v428 = vadd.f32 %v43, %v427
  %v429 = vpop.f32.mrf.mxu0
  %v430 = vpop.f32.mrf.mxu0
  %v431 = vadd.f32 %v43, %v430
  %v432 = vpop.f32.mrf.mxu0
  %433 = vdwg.mxu0
  %v434 = vmul.f32 %v420, %v420
  %v435 = vmul.f32 %v423, %v423
  %v436 = vmul.f32 %v428, %v428
  %v437 = vmul.f32 %v431, %v431
  %v438 = vmax.f32 %v352, %v434
  %v439 = vmax.f32 %v353, %v435
  %v440 = vmax.f32 %v354, %v436
  %v441 = vmax.f32 %v355, %v437
  %442 = vst [vmem:[%s3] sm:$0xff] %v438
  %443 = vst [vmem:[%s3 + $0x8] sm:$0xff] %v439
  %444 = vst [vmem:[%s3 + $0x10] sm:$0xff] %v440
  %445 = vst [vmem:[%s3 + $0x18] sm:$0xff] %v441
  // Predicated region
  $region14: #{square_lenet_forward.4} parent=0 // pred_check
    _
  $region15: #{square_lenet_forward.4} parent=0 // pred_check_branch
    %447 = sbr.rel (0) target = $region17
  $region16: #{square_lenet_forward.4} parent=0 // pred_region
    _
  $region17: #{square_lenet_forward.4} parent=0 // pred_fallthru
    _
  // Predicated region
  $region18: #{square_lenet_forward.4} parent=0 // pred_check
    _
  $region19: #{square_lenet_forward.4} parent=0 // pred_check_branch
    %449 = sbr.rel (0) target = $region21
  $region20: #{square_lenet_forward.4} parent=0 // pred_region
    _
  $region21: #{square_lenet_forward.4} parent=0 // pred_fallthru
    _

// kernel: square_lenet_forward.5
$region0: #{square_lenet_forward.5}
  #allocation0 [shape = 'u32[]', space=smem, size = 0x4, offset = 0x4, fixed_abs, tag = 'smem constant byte address 0x4 - core index']
  #allocation1 [shape = 'u32[144,128]{1,0:T(1,128)}', space=vmem, size = 0x12000, scoped, tag = 'internal scratch']
  %s0 = inlined_call_operand.vmem [shape: bf16[2,256], index: 0, kind: input, shape index: {}]
  %s1 = inlined_call_operand.vmem [shape: bf16[256,128], index: 1, kind: input, shape index: {}]
  %s2 = inlined_call_operand.vmem [shape: f32[1,128], index: 2, kind: input, shape index: {}]
  %s3 = inlined_call_operand.vmem [shape: bf16[128,128], index: 3, kind: input, shape index: {}]
  %s4 = inlined_call_operand.vmem [shape: f32[1,128], index: 4, kind: input, shape index: {}]
  %s5 = inlined_call_operand.vmem [shape: bf16[128,128], index: 5, kind: input, shape index: {}]
  %s6 = inlined_call_operand.vmem [shape: f32[1,128], index: 6, kind: input, shape index: {}]
  %s7 = inlined_call_operand.hbm [shape: f32[2,128], index: 7, kind: output, shape index: {}]
  %s8 = sld [smem:[#allocation0]]
  $region38: #{square_lenet_forward.5} parent=0
    _
  %s10 = ssub.s32 1, %s8
  %s11 = scalar_select 0, %s10, %s8
  $region1: #{square_lenet_forward.5} parent=0
    #allocation2 [shape = 'u8[1024]{0}', space=vmem, size = 0x400, scoped, tag = 'output window, operand 0, single buffered']
    #allocation3 [shape = 's32[1]{0}', space=sflag, size = 0x4, scoped, tag = 'scoped memory for square_lenet_forward.5']
    %12 = vsyncpa [#allocation3], 0
    // Predicated region
    $region2: #{square_lenet_forward.5} parent=1 // pred_check
      _
    $region3: #{square_lenet_forward.5} parent=1 // pred_check_branch
      %14 = sbr.rel (0) target = $region5
    $region4: #{square_lenet_forward.5} parent=1 // pred_region
      _
    $region5: #{square_lenet_forward.5} parent=1 // pred_fallthru
      _
    // Predicated region
    $region6: #{square_lenet_forward.5} parent=1 // pred_check
      _
    $region7: #{square_lenet_forward.5} parent=1 // pred_check_branch
      %16 = sbr.rel (0) target = $region9
    $region8: #{square_lenet_forward.5} parent=1 // pred_region
      _
    $region9: #{square_lenet_forward.5} parent=1 // pred_fallthru
      _
    // Predicated region
    $region10: #{square_lenet_forward.5} parent=1 // pred_check
      _
    $region11: #{square_lenet_forward.5} parent=1 // pred_check_branch
      %18 = sbr.rel (0) target = $region13
    $region12: #{square_lenet_forward.5} parent=1 // pred_region
      _
    $region13: #{square_lenet_forward.5} parent=1 // pred_fallthru
      _
    // Predicated region
    $region14: #{square_lenet_forward.5} parent=1 // pred_check
      _
    $region15: #{square_lenet_forward.5} parent=1 // pred_check_branch
      %20 = sbr.rel (0) target = $region17
    $region16: #{square_lenet_forward.5} parent=1 // pred_region
      _
    $region17: #{square_lenet_forward.5} parent=1 // pred_fallthru
      _
    // Predicated region
    $region18: #{square_lenet_forward.5} parent=1 // pred_check
      _
    $region19: #{square_lenet_forward.5} parent=1 // pred_check_branch
      %22 = sbr.rel (0) target = $region21
    $region20: #{square_lenet_forward.5} parent=1 // pred_region
      _
    $region21: #{square_lenet_forward.5} parent=1 // pred_fallthru
      _
    // Predicated region
    $region22: #{square_lenet_forward.5} parent=1 // pred_check
      _
    $region23: #{square_lenet_forward.5} parent=1 // pred_check_branch
      %24 = sbr.rel (0) target = $region25
    $region24: #{square_lenet_forward.5} parent=1 // pred_region
      _
    $region25: #{square_lenet_forward.5} parent=1 // pred_fallthru
      _
    // Predicated region
    $region26: #{square_lenet_forward.5} parent=1 // pred_check
      _
    $region27: #{square_lenet_forward.5} parent=1 // pred_check_branch
      %26 = sbr.rel (0) target = $region29
    $region28: #{square_lenet_forward.5} parent=1 // pred_region
      _
    $region29: #{square_lenet_forward.5} parent=1 // pred_fallthru
      _
    %v28 = vld [vmem:[%s0] sm:$0x3]
    %v29 = vld [vmem:[%s1] sm:$0xf]
    %v30 = vld [vmem:[%s1 + $0x4] sm:$0xf]
    %v31 = vld [vmem:[%s1 + $0x8] sm:$0xf]
    %v32 = vld [vmem:[%s1 + $0xc] sm:$0xf]
    %v33 = vld [vmem:[%s1 + $0x10] sm:$0xf]
    %v34 = vld [vmem:[%s1 + $0x14] sm:$0xf]
    %v35 = vld [vmem:[%s1 + $0x18] sm:$0xf]
    %v36 = vld [vmem:[%s1 + $0x1c] sm:$0xf]
    %v37 = vld [vmem:[%s1 + $0x20] sm:$0xf]
    %v38 = vld [vmem:[%s1 + $0x24] sm:$0xf]
    %v39 = vld [vmem:[%s1 + $0x28] sm:$0xf]
    %v40 = vld [vmem:[%s1 + $0x2c] sm:$0xf]
    %v41 = vld [vmem:[%s1 + $0x30] sm:$0xf]
    %v42 = vld [vmem:[%s1 + $0x34] sm:$0xf]
    %v43 = vld [vmem:[%s1 + $0x38] sm:$0xf]
    %v44 = vld [vmem:[%s1 + $0x3c] sm:$0xf]
    %v45 = vld [vmem:[%s1 + $0x40] sm:$0xf]
    %v46 = vld [vmem:[%s1 + $0x44] sm:$0xf]
    %v47 = vld [vmem:[%s1 + $0x48] sm:$0xf]
    %v48 = vld [vmem:[%s1 + $0x4c] sm:$0xf]
    %v49 = vld [vmem:[%s1 + $0x50] sm:$0xf]
    %v50 = vld [vmem:[%s1 + $0x54] sm:$0xf]
    %v51 = vld [vmem:[%s1 + $0x58] sm:$0xf]
    %v52 = vld [vmem:[%s1 + $0x5c] sm:$0xf]
    %v53 = vld [vmem:[%s1 + $0x60] sm:$0xf]
    %v54 = vld [vmem:[%s1 + $0x64] sm:$0xf]
    %v55 = vld [vmem:[%s1 + $0x68] sm:$0xf]
    %v56 = vld [vmem:[%s1 + $0x6c] sm:$0xf]
    %v57 = vld [vmem:[%s1 + $0x70] sm:$0xf]
    %v58 = vld [vmem:[%s1 + $0x74] sm:$0xf]
    %v59 = vld [vmem:[%s1 + $0x78] sm:$0xf]
    %v60 = vld [vmem:[%s1 + $0x7c] sm:$0xf]
    %v61 = vld [vmem:[%s2] sm:$0x1]
    %v63 = vlaneseq
    %v64 = vshrl.u32 %v63, 7
    %v65 = vsub.s32 0, %v64
    %v66 = vrot.slane %v61, %v65
    %v70 = vunpack.c.l.s4 1966171168
    %v71 = vunpack.c.0.s8 %v70
    %v72 = vlaneseq
    %v73 = vshrl.u32 %v72, 7
    %v74 = vsub.s32 %v71, %v73
    %v75 = vrot.slane %v28, %v74
    %v76 = vcombine.high %v75, %v75
    %v78 = vunpack.c.l.s4 1966171168
    %v79 = vunpack.c.0.s8 %v78
    %v80 = vlaneseq
    %v81 = vshrl.u32 %v80, 7
    %v82 = vsub.s32 %v79, %v81
    %v83 = vrot.slane %v75, %v82
    %v85 = vunpack.c.l.s4 1966171168
    %v86 = vunpack.c.0.s8 %v85
    %v87 = vlaneseq
    %v88 = vshrl.u32 %v87, 7
    %v89 = vsub.s32 %v86, %v88
    %v90 = vrot.slane %v76, %v89
    %v125 = vunpack.c.l.b16 %v29
    %v126 = vunpack.c.l.b16 %v30
    %v127 = vunpack.c.l.b16 %v31
    %v128 = vunpack.c.l.b16 %v32
    %v129 = vunpack.c.l.b16 %v33
    %v130 = vunpack.c.l.b16 %v34
    %v131 = vunpack.c.l.b16 %v35
    %v132 = vunpack.c.l.b16 %v36
    %v133 = vunpack.c.l.b16 %v37
    %v134 = vunpack.c.l.b16 %v38
    %v135 = vunpack.c.l.b16 %v39
    %v136 = vunpack.c.l.b16 %v40
    %v137 = vunpack.c.l.b16 %v41
    %v138 = vunpack.c.l.b16 %v42
    %v139 = vunpack.c.l.b16 %v43
    %v140 = vunpack.c.l.b16 %v44
    %v141 = vunpack.c.l.b16 %v45
    %v142 = vunpack.c.l.b16 %v46
    %v143 = vunpack.c.l.b16 %v47
    %v144 = vunpack.c.l.b16 %v48
    %v145 = vunpack.c.l.b16 %v49
    %v146 = vunpack.c.l.b16 %v50
    %v147 = vunpack.c.l.b16 %v51
    %v148 = vunpack.c.l.b16 %v52
    %v149 = vunpack.c.l.b16 %v53
    %v150 = vunpack.c.l.b16 %v54
    %v151 = vunpack.c.l.b16 %v55
    %v152 = vunpack.c.l.b16 %v56
    %v153 = vunpack.c.l.b16 %v57
    %v154 = vunpack.c.l.b16 %v58
    %v155 = vunpack.c.l.b16 %v59
    %v156 = vunpack.c.l.b16 %v60
    %v157 = vpack.c.b16 %v126, %v125
    %v158 = vpack.c.b16 %v128, %v127
    %v159 = vpack.c.b16 %v130, %v129
    %v160 = vpack.c.b16 %v132, %v131
    %v161 = vpack.c.b16 %v134, %v133
    %v162 = vpack.c.b16 %v136, %v135
    %v163 = vpack.c.b16 %v138, %v137
    %v164 = vpack.c.b16 %v140, %v139
    %v165 = vpack.c.b16 %v142, %v141
    %v166 = vpack.c.b16 %v144, %v143
    %v167 = vpack.c.b16 %v146, %v145
    %v168 = vpack.c.b16 %v148, %v147
    %v169 = vpack.c.b16 %v150, %v149
    %v170 = vpack.c.b16 %v152, %v151
    %v171 = vpack.c.b16 %v154, %v153
    %v172 = vpack.c.b16 %v156, %v155
    %189 = vmatprep.subr.bf16.mxu0 0
    %190 = vmatpush1.bf16.msra.mxu0 %v164
    %191 = vmatprep.subr.bf16.mxu0 0
    %192 = vmatpush1.bf16.msra.mxu0 %v163
    %193 = vmatprep.subr.bf16.mxu0 0
    %194 = vmatpush1.bf16.msra.mxu0 %v162
    %195 = vmatprep.subr.bf16.mxu0 0
    %196 = vmatpush1.bf16.msra.mxu0 %v161
    %197 = vmatprep.subr.bf16.mxu0 0
    %198 = vmatpush1.bf16.msra.mxu0 %v160
    %199 = vmatprep.subr.bf16.mxu0 0
    %200 = vmatpush1.bf16.msra.mxu0 %v159
    %201 = vmatprep.subr.bf16.mxu0 0
    %202 = vmatpush1.bf16.msra.mxu0 %v158
    %203 = vmatprep.subr.bf16.mxu0 0
    %204 = vmatpush1.bf16.msra.mxu0 %v157
    %205 = vmatprep.subr.bf16.mxu0 0
    %206 = vmatpush2.bf16.msra.mxu0 %v172
    %207 = vmatprep.subr.bf16.mxu0 0
    %208 = vmatpush2.bf16.msra.mxu0 %v171
    %209 = vmatprep.subr.bf16.mxu0 0
    %210 = vmatpush2.bf16.msra.mxu0 %v170
    %211 = vmatprep.subr.bf16.mxu0 0
    %212 = vmatpush2.bf16.msra.mxu0 %v169
    %213 = vmatprep.subr.bf16.mxu0 0
    %214 = vmatpush2.bf16.msra.mxu0 %v168
    %215 = vmatprep.subr.bf16.mxu0 0
    %216 = vmatpush2.bf16.msra.mxu0 %v167
    %217 = vmatprep.subr.bf16.mxu0 0
    %218 = vmatpush2.bf16.msra.mxu0 %v166
    %219 = vmatprep.subr.bf16.mxu0 0
    %220 = vmatpush2.bf16.msra.mxu0 %v165
    %221 = vmatprep.mubr.bf16.mxu0 %v90
    %222 = vmatmul.mubr.bf16.gmra.mxu0 %v83
    %v223 = vpop.f32.mrf.mxu0
    %v224 = vadd.f32 %v66, %v223
    %v225 = vpop.f32.mrf.mxu0
    %v226 = vpop.f32.mrf.mxu0
    %v227 = vpop.f32.mrf.mxu0
    %228 = vdwg.mxu0
    %v229 = vmul.f32 %v224, %v224
    %v230 = vpack.c.bf16 %v229, %v229
    %v231 = vld [vmem:[%s3] sm:$0xf]
    %v232 = vld [vmem:[%s3 + $0x4] sm:$0xf]
    %v233 = vld [vmem:[%s3 + $0x8] sm:$0xf]
    %v234 = vld [vmem:[%s3 + $0xc] sm:$0xf]
    %v235 = vld [vmem:[%s3 + $0x10] sm:$0xf]
    %v236 = vld [vmem:[%s3 + $0x14] sm:$0xf]
    %v237 = vld [vmem:[%s3 + $0x18] sm:$0xf]
    %v238 = vld [vmem:[%s3 + $0x1c] sm:$0xf]
    %v239 = vld [vmem:[%s3 + $0x20] sm:$0xf]
    %v240 = vld [vmem:[%s3 + $0x24] sm:$0xf]
    %v241 = vld [vmem:[%s3 + $0x28] sm:$0xf]
    %v242 = vld [vmem:[%s3 + $0x2c] sm:$0xf]
    %v243 = vld [vmem:[%s3 + $0x30] sm:$0xf]
    %v244 = vld [vmem:[%s3 + $0x34] sm:$0xf]
    %v245 = vld [vmem:[%s3 + $0x38] sm:$0xf]
    %v246 = vld [vmem:[%s3 + $0x3c] sm:$0xf]
    %v247 = vld [vmem:[%s4] sm:$0x1]
    %v249 = vlaneseq
    %v250 = vshrl.u32 %v249, 7
    %v251 = vsub.s32 0, %v250
    %v252 = vrot.slane %v247, %v251
    %v270 = vunpack.c.l.b16 %v231
    %v271 = vunpack.c.l.b16 %v232
    %v272 = vunpack.c.l.b16 %v233
    %v273 = vunpack.c.l.b16 %v234
    %v274 = vunpack.c.l.b16 %v235
    %v275 = vunpack.c.l.b16 %v236
    %v276 = vunpack.c.l.b16 %v237
    %v277 = vunpack.c.l.b16 %v238
    %v278 = vunpack.c.l.b16 %v239
    %v279 = vunpack.c.l.b16 %v240
    %v280 = vunpack.c.l.b16 %v241
    %v281 = vunpack.c.l.b16 %v242
    %v282 = vunpack.c.l.b16 %v243
    %v283 = vunpack.c.l.b16 %v244
    %v284 = vunpack.c.l.b16 %v245
    %v285 = vunpack.c.l.b16 %v246
    %v286 = vpack.c.b16 %v271, %v270
    %v287 = vpack.c.b16 %v273, %v272
    %v288 = vpack.c.b16 %v275, %v274
    %v289 = vpack.c.b16 %v277, %v276
    %v290 = vpack.c.b16 %v279, %v278
    %v291 = vpack.c.b16 %v281, %v280
    %v292 = vpack.c.b16 %v283, %v282
    %v293 = vpack.c.b16 %v285, %v284
    %302 = vmatprep.subr.bf16.mxu0 0
    %303 = vmatpush1.bf16.msra.mxu0 %v293
    %304 = vmatprep.subr.bf16.mxu0 0
    %305 = vmatpush1.bf16.msra.mxu0 %v292
    %306 = vmatprep.subr.bf16.mxu0 0
    %307 = vmatpush1.bf16.msra.mxu0 %v291
    %308 = vmatprep.subr.bf16.mxu0 0
    %309 = vmatpush1.bf16.msra.mxu0 %v290
    %310 = vmatprep.subr.bf16.mxu0 0
    %311 = vmatpush1.bf16.msra.mxu0 %v289
    %312 = vmatprep.subr.bf16.mxu0 0
    %313 = vmatpush1.bf16.msra.mxu0 %v288
    %314 = vmatprep.subr.bf16.mxu0 0
    %315 = vmatpush1.bf16.msra.mxu0 %v287
    %316 = vmatprep.subr.bf16.mxu0 0
    %317 = vmatpush1.bf16.msra.mxu0 %v286
    %318 = vmatprep.subr.bf16.mxu0 0
    %319 = vmatpush2.bf16.msra.mxu0 0
    %320 = vmatprep.subr.bf16.mxu0 0
    %321 = vmatpush2.bf16.msra.mxu0 0
    %322 = vmatprep.subr.bf16.mxu0 0
    %323 = vmatpush2.bf16.msra.mxu0 0
    %324 = vmatprep.subr.bf16.mxu0 0
    %325 = vmatpush2.bf16.msra.mxu0 0
    %326 = vmatprep.subr.bf16.mxu0 0
    %327 = vmatpush2.bf16.msra.mxu0 0
    %328 = vmatprep.subr.bf16.mxu0 0
    %329 = vmatpush2.bf16.msra.mxu0 0
    %330 = vmatprep.subr.bf16.mxu0 0
    %331 = vmatpush2.bf16.msra.mxu0 0
    %332 = vmatprep.subr.bf16.mxu0 0
    %333 = vmatpush2.bf16.msra.mxu0 0
    %334 = vmatprep.mubr.bf16.mxu0 0
    %335 = vmatmul.mubr.bf16.gmra.mxu0 %v230
    %v336 = vpop.f32.mrf.mxu0
    %v337 = vadd.f32 %v252, %v336
    %v338 = vpop.f32.mrf.mxu0
    %v339 = vpop.f32.mrf.mxu0
    %v340 = vpop.f32.mrf.mxu0
    %341 = vdwg.mxu0
    %v342 = vmul.f32 %v337, %v337
    %v343 = vpack.c.bf16 %v342, %v342
    %v344 = vld [vmem:[%s5] sm:$0xf]
    %v345 = vld [vmem:[%s5 + $0x4] sm:$0xf]
    %v346 = vld [vmem:[%s5 + $0x8] sm:$0xf]
    %v347 = vld [vmem:[%s5 + $0xc] sm:$0xf]
    %v348 = vld [vmem:[%s5 + $0x10] sm:$0xf]
    %v349 = vld [vmem:[%s5 + $0x14] sm:$0xf]
    %v350 = vld [vmem:[%s5 + $0x18] sm:$0xf]
    %v351 = vld [vmem:[%s5 + $0x1c] sm:$0xf]
    %v352 = vld [vmem:[%s5 + $0x20] sm:$0xf]
    %v353 = vld [vmem:[%s5 + $0x24] sm:$0xf]
    %v354 = vld [vmem:[%s5 + $0x28] sm:$0xf]
    %v355 = vld [vmem:[%s5 + $0x2c] sm:$0xf]
    %v356 = vld [vmem:[%s5 + $0x30] sm:$0xf]
    %v357 = vld [vmem:[%s5 + $0x34] sm:$0xf]
    %v358 = vld [vmem:[%s5 + $0x38] sm:$0xf]
    %v359 = vld [vmem:[%s5 + $0x3c] sm:$0xf]
    %v360 = vld [vmem:[%s6] sm:$0x1]
    %v362 = vlaneseq
    %v363 = vshrl.u32 %v362, 7
    %v364 = vsub.s32 0, %v363
    %v365 = vrot.slane %v360, %v364
    %v383 = vunpack.c.l.b16 %v344
    %v384 = vunpack.c.l.b16 %v345
    %v385 = vunpack.c.l.b16 %v346
    %v386 = vunpack.c.l.b16 %v347
    %v387 = vunpack.c.l.b16 %v348
    %v388 = vunpack.c.l.b16 %v349
    %v389 = vunpack.c.l.b16 %v350
    %v390 = vunpack.c.l.b16 %v351
    %v391 = vunpack.c.l.b16 %v352
    %v392 = vunpack.c.l.b16 %v353
    %v393 = vunpack.c.l.b16 %v354
    %v394 = vunpack.c.l.b16 %v355
    %v395 = vunpack.c.l.b16 %v356
    %v396 = vunpack.c.l.b16 %v357
    %v397 = vunpack.c.l.b16 %v358
    %v398 = vunpack.c.l.b16 %v359
    %v399 = vpack.c.b16 %v384, %v383
    %v400 = vpack.c.b16 %v386, %v385
    %v401 = vpack.c.b16 %v388, %v387
    %v402 = vpack.c.b16 %v390, %v389
    %v403 = vpack.c.b16 %v392, %v391
    %v404 = vpack.c.b16 %v394, %v393
    %v405 = vpack.c.b16 %v396, %v395
    %v406 = vpack.c.b16 %v398, %v397
    %415 = vmatprep.subr.bf16.mxu0 0
    %416 = vmatpush1.bf16.msra.mxu0 %v406
    %417 = vmatprep.subr.bf16.mxu0 0
    %418 = vmatpush1.bf16.msra.mxu0 %v405
    %419 = vmatprep.subr.bf16.mxu0 0
    %420 = vmatpush1.bf16.msra.mxu0 %v404
    %421 = vmatprep.subr.bf16.mxu0 0
    %422 = vmatpush1.bf16.msra.mxu0 %v403
    %423 = vmatprep.subr.bf16.mxu0 0
    %424 = vmatpush1.bf16.msra.mxu0 %v402
    %425 = vmatprep.subr.bf16.mxu0 0
    %426 = vmatpush1.bf16.msra.mxu0 %v401
    %427 = vmatprep.subr.bf16.mxu0 0
    %428 = vmatpush1.bf16.msra.mxu0 %v400
    %429 = vmatprep.subr.bf16.mxu0 0
    %430 = vmatpush1.bf16.msra.mxu0 %v399
    %431 = vmatprep.subr.bf16.mxu0 0
    %432 = vmatpush2.bf16.msra.mxu0 0
    %433 = vmatprep.subr.bf16.mxu0 0
    %434 = vmatpush2.bf16.msra.mxu0 0
    %435 = vmatprep.subr.bf16.mxu0 0
    %436 = vmatpush2.bf16.msra.mxu0 0
    %437 = vmatprep.subr.bf16.mxu0 0
    %438 = vmatpush2.bf16.msra.mxu0 0
    %439 = vmatprep.subr.bf16.mxu0 0
    %440 = vmatpush2.bf16.msra.mxu0 0
    %441 = vmatprep.subr.bf16.mxu0 0
    %442 = vmatpush2.bf16.msra.mxu0 0
    %443 = vmatprep.subr.bf16.mxu0 0
    %444 = vmatpush2.bf16.msra.mxu0 0
    %445 = vmatprep.subr.bf16.mxu0 0
    %446 = vmatpush2.bf16.msra.mxu0 0
    %447 = vmatprep.mubr.bf16.mxu0 0
    %448 = vmatmul.mubr.bf16.gmra.mxu0 %v343
    %v449 = vpop.f32.mrf.mxu0
    %v450 = vadd.f32 %v365, %v449
    %v451 = vpop.f32.mrf.mxu0
    %v452 = vpop.f32.mrf.mxu0
    %v453 = vpop.f32.mrf.mxu0
    %454 = vdwg.mxu0
    %455 = vst [vmem:[#allocation2] sm:$0x3] %v450
    // Predicated region
    $region30: #{square_lenet_forward.5} parent=1 // pred_check
      _
    $region31: #{square_lenet_forward.5} parent=1 // pred_check_branch
      %457 = sbr.rel (0) target = $region33
    $region32: #{square_lenet_forward.5} parent=1 // pred_region
      %s459 = ssub.s32 32, 32
      %460 = vsyncadd [#allocation3], %s459
      %s462 = sshll.u32 [#allocation2], 4
      %s463 = int_to_ptr.vmem [resolvable:$true] %s462
      %465 = dma.vmem_to_hbm [thread:$0]  %s463, 32, %s7, [#allocation3]
    $region33: #{square_lenet_forward.5} parent=1 // pred_fallthru
      _
    // Predicated region
    $region34: #{square_lenet_forward.5} parent=1 // pred_check
      _
    $region35: #{square_lenet_forward.5} parent=1 // pred_check_branch
      %467 = sbr.rel (0) target = $region37
    $region36: #{square_lenet_forward.5} parent=1 // pred_region
      %468 = dma.done [#allocation3], 32
    $region37: #{square_lenet_forward.5} parent=1 // pred_fallthru
      _
    %469 = vsyncpa [#allocation3], 1

</llo_original>
